<compile_context>
chip_gen: v6e
topology: v6e:2x2x1
jax: 0.10.0
libtpu: 0.0.40
codegen_flags: <defaults>
</compile_context>

<pallas_src>
import jax
import jax.numpy as jnp
from jax.experimental import pallas as pl
from jax.experimental.pallas import tpu as pltpu


def _encoder_gru_kernel(src_ref, lens_ref, gi_tab_ref, whh_ref, bhn_ref,
                        out_ref, hid_ref, gi_scr):
    """Fused Encoder forward.

    src_ref   : SMEM (S*B,) int32 token ids (time-major, flattened).
    lens_ref  : VMEM (B, 1) int32 sequence lengths.
    gi_tab_ref: VMEM (V, 1, 3H) f32 embedding table pre-multiplied by W_ih^T
                with fused biases baked in.
    whh_ref   : VMEM (H, 3H) f32 recurrent weights (transposed).
    bhn_ref   : VMEM (1, H) f32 recurrent n-gate bias.
    out_ref   : VMEM (B, S*H) f32 lane-dense outputs (zero past each length).
    hid_ref   : VMEM (B, H)  f32 final hidden state.
    gi_scr    : VMEM (S*B, 3H) f32 scratch for gathered input projections.
    """
    B, H = hid_ref.shape
    S = gi_scr.shape[0] // B

    # Phase 1: embedding + input projection == a row gather from the folded
    # (vocab, 3H) table.  Rows go to a VMEM scratch so the unrolled loop below
    # does not carry the whole (S*B, 3H) value in vregs.
    for i in range(S * B):
        tok = src_ref[i]                              # scalar read from SMEM
        gi_scr[pl.ds(i, 1), :] = gi_tab_ref[tok]      # (1, 3H) row copy

    lens = lens_ref[...]                              # (B, 1) int32, loaded once
    whh = whh_ref[...]                                # (H, 3H), loop-invariant
    bhn = bhn_ref[...]                                # (1, H)

    # Phase 2: serial recurrence, fully unrolled (S small & static) so the
    # scheduler sees the whole chain; h lives in vregs, no per-step DMAs.
    h = jnp.zeros((B, H), jnp.float32)
    for t in range(S):
        gi = gi_scr[pl.ds(t * B, B), :]                               # (B, 3H)
        gh = jnp.dot(h, whh, preferred_element_type=jnp.float32)      # (B, 3H)

        # PyTorch gate order along 3H: r, z, n.  One sigmoid over the packed
        # (B, 2H) r/z slab halves the EUP round-trips on the critical chain.
        rz = jax.nn.sigmoid(gi[:, :2 * H] + gh[:, :2 * H])
        r = rz[:, :H]
        z = rz[:, H:]
        n = jnp.tanh(gi[:, 2 * H:] + r * (gh[:, 2 * H:] + bhn))

        h_new = n + z * (h - n)            # == (1 - z) * n + z * h
        valid = t < lens                   # (B, 1) bool: t < src_len[b]
        h = jnp.where(valid, h_new, h)     # hidden freezes past the length
        # Lane-dense write: columns [t*H, (t+1)*H) of the (B, S*H) output.
        out_ref[:, t * H:(t + 1) * H] = jnp.where(valid, h_new, 0.0)

    hid_ref[...] = h                       # final hidden written once


def gru_encoder_forward(src, src_len, gi_table, w_hh_t, b_hn):
    """src: (S, B) int32 tokens; src_len: (B,) int32 (sorted desc, max == S)."""
    S, B = src.shape
    H = w_hh_t.shape[0]
    V = gi_table.shape[0]

    src_flat = src.reshape(S * B).astype(jnp.int32)          # SMEM token ids
    lens = src_len.astype(jnp.int32).reshape(B, 1)
    gi_tab3 = gi_table.reshape(V, 1, 3 * H)                  # leading-dim gather

    vmem = pl.BlockSpec(memory_space=pltpu.MemorySpace.VMEM)
    smem = pl.BlockSpec(memory_space=pltpu.MemorySpace.SMEM)

    out_flat, hidden = pl.pallas_call(
        _encoder_gru_kernel,
        out_shape=(
            jax.ShapeDtypeStruct((B, S * H), jnp.float32),   # lane-dense output
            jax.ShapeDtypeStruct((B, H), jnp.float32),
        ),
        in_specs=[smem, vmem, vmem, vmem, vmem],
        out_specs=(vmem, vmem),
        scratch_shapes=[pltpu.VMEM((S * B, 3 * H), jnp.float32)],
        compiler_params=pltpu.CompilerParams(vmem_limit_bytes=32 * 1024 * 1024),
    )(src_flat, lens, gi_tab3, w_hh_t, b_hn)

    # (B, S*H) -> (S, B, H): trivial layout op on a few KB in the wrapper.
    outputs = out_flat.reshape(B, S, H).transpose(1, 0, 2)
    return outputs, hidden[None, :, :]                       # hidden -> (1, B, H)


def fold_encoder_params(params):
    """One-time parameter preprocessing: fold W_ih (+ fused biases) into the
    embedding table.  Valid only with eval-mode (identity) dropout."""
    H = params["w_hh_t"].shape[0]
    b_i = jnp.concatenate([params["b_ih"][:2 * H] + params["b_hh"][:2 * H],
                           params["b_ih"][2 * H:]])          # (3H,)
    gi_table = params["emb"] @ params["w_ih_t"] + b_i[None, :]   # (V, 3H)
    b_hn = params["b_hh"][2 * H:].reshape(1, H)
    return {"gi_table": gi_table, "w_hh_t": params["w_hh_t"], "b_hn": b_hn}


def encoder_forward(src, src_len, folded_params):
    # Dropout is eval-mode identity; the module's self.fc is unused in forward.
    return gru_encoder_forward(src, src_len, folded_params["gi_table"],
                               folded_params["w_hh_t"], folded_params["b_hn"])


def _reference_forward(src, src_len, params):
    """Pure-JAX reference (lax.scan) mirroring packed-GRU semantics."""
    emb = jnp.take(params["emb"], src, axis=0)               # (S, B, E)
    S, B, _ = emb.shape
    H = params["w_hh_t"].shape[0]
    mask = (jnp.arange(S)[:, None] < src_len[None, :]).astype(jnp.float32)

    def step(h, xs):
        x_t, m_t = xs
        gi = x_t @ params["w_ih_t"] + params["b_ih"]
        gh = h @ params["w_hh_t"] + params["b_hh"]
        r = jax.nn.sigmoid(gi[:, :H] + gh[:, :H])
        z = jax.nn.sigmoid(gi[:, H:2 * H] + gh[:, H:2 * H])
        n = jnp.tanh(gi[:, 2 * H:] + r * gh[:, 2 * H:])
        h_new = (1.0 - z) * n + z * h
        m = m_t[:, None]
        h_next = m * h_new + (1.0 - m) * h
        return h_next, m * h_new

    h0 = jnp.zeros((B, H), jnp.float32)
    h_final, outs = jax.lax.scan(step, h0, (emb, mask))
    return outs, h_final[None]


def make_params(key, input_dim, emb_dim, enc_hid_dim):
    k_emb, k_wih, k_whh, k_bih, k_bhh = jax.random.split(key, 5)
    bound = 1.0 / jnp.sqrt(enc_hid_dim)
    return {
        "emb": jax.random.normal(k_emb, (input_dim, emb_dim), jnp.float32),
        # stored transposed relative to PyTorch: (E, 3H) and (H, 3H)
        "w_ih_t": jax.random.uniform(k_wih, (emb_dim, 3 * enc_hid_dim),
                                     jnp.float32, -bound, bound),
        "w_hh_t": jax.random.uniform(k_whh, (enc_hid_dim, 3 * enc_hid_dim),
                                     jnp.float32, -bound, bound),
        "b_ih": jax.random.uniform(k_bih, (3 * enc_hid_dim,),
                                   jnp.float32, -bound, bound),
        "b_hh": jax.random.uniform(k_bhh, (3 * enc_hid_dim,),
                                   jnp.float32, -bound, bound),
    }


if __name__ == "__main__":
    INPUT_DIM, EMB_DIM, ENC_HID, DEC_HID, DROPOUT = 50, 32, 32, 32, 0.1
    S, B = 8, 8

    key = jax.random.PRNGKey(0)
    k_src, k_par = jax.random.split(key)
    params = make_params(k_par, INPUT_DIM, EMB_DIM, ENC_HID)

    src = jax.random.randint(k_src, (S, B), 0, INPUT_DIM, dtype=jnp.int32)
    # lengths sorted descending (pack_padded_sequence enforce_sorted=True);
    # max length must equal S so the padded output length matches.
    src_len = jnp.array([8, 8, 7, 5, 5, 4, 3, 2], dtype=jnp.int32)
    assert int(src_len.max()) == S, "pad_packed semantics require max(src_len) == S"

    folded = fold_encoder_params(params)        # one-time parameter fold
    outputs, hidden = encoder_forward(src, src_len, folded)
    jax.block_until_ready((outputs, hidden))

    ref_out, ref_hid = _reference_forward(src, src_len, params)
    assert outputs.shape == (S, B, ENC_HID) and hidden.shape == (1, B, ENC_HID)
    assert jnp.allclose(outputs, ref_out, atol=1e-5, rtol=1e-5)
    assert jnp.allclose(hidden, ref_hid, atol=1e-5, rtol=1e-5)

    print("KERNEL_OK")
</pallas_src>

<mosaic_0001>
module attributes {stable_mosaic.version = 11 : i64} {
  func.func @_encoder_gru_kernel(%arg0: memref<64xi32, #tpu.memory_space<smem>>, %arg1: memref<8x1xi32, #tpu.memory_space<vmem>>, %arg2: memref<50x1x96xf32, #tpu.memory_space<vmem>>, %arg3: memref<32x96xf32, #tpu.memory_space<vmem>>, %arg4: memref<1x32xf32, #tpu.memory_space<vmem>>, %arg5: memref<8x256xf32, #tpu.memory_space<vmem>>, %arg6: memref<8x32xf32, #tpu.memory_space<vmem>>, %arg7: memref<64x96xf32, #tpu.memory_space<vmem>>) attributes {dimension_semantics = [], scalar_prefetch = 0 : i64, scratch_operands = 1 : i64, tpu.core_type = #tpu.core_type<tc>} {
    %c0 = arith.constant 0 : index
    %0 = memref.load %arg0[%c0] : memref<64xi32, #tpu.memory_space<smem>>
    %1 = arith.index_cast %0 : i32 to index
    %c0_0 = arith.constant 0 : index
    %c0_1 = arith.constant 0 : index
    %2 = vector.load %arg2[%1, %c0_0, %c0_1] : memref<50x1x96xf32, #tpu.memory_space<vmem>>, vector<1x1x96xf32>
    %3 = vector.shape_cast %2 : vector<1x1x96xf32> to vector<1x96xf32>
    %c0_2 = arith.constant 0 : index
    %c0_3 = arith.constant 0 : index
    %4 = vector.load %arg7[%c0_2, %c0_3] : memref<64x96xf32, #tpu.memory_space<vmem>>, vector<1x96xf32>
    tpu.vector_store %arg7[%c0_2, %c0_3], %3 {strides = array<i32>} : memref<64x96xf32, #tpu.memory_space<vmem>>, vector<1x96xf32>,
    %c1 = arith.constant 1 : index
    %5 = memref.load %arg0[%c1] : memref<64xi32, #tpu.memory_space<smem>>
    %6 = arith.index_cast %5 : i32 to index
    %c0_4 = arith.constant 0 : index
    %c0_5 = arith.constant 0 : index
    %7 = vector.load %arg2[%6, %c0_4, %c0_5] : memref<50x1x96xf32, #tpu.memory_space<vmem>>, vector<1x1x96xf32>
    %8 = vector.shape_cast %7 : vector<1x1x96xf32> to vector<1x96xf32>
    %c1_6 = arith.constant 1 : index
    %c0_7 = arith.constant 0 : index
    %9 = vector.load %arg7[%c1_6, %c0_7] : memref<64x96xf32, #tpu.memory_space<vmem>>, vector<1x96xf32>
    tpu.vector_store %arg7[%c1_6, %c0_7], %8 {strides = array<i32>} : memref<64x96xf32, #tpu.memory_space<vmem>>, vector<1x96xf32>,
    %c2 = arith.constant 2 : index
    %10 = memref.load %arg0[%c2] : memref<64xi32, #tpu.memory_space<smem>>
    %11 = arith.index_cast %10 : i32 to index
    %c0_8 = arith.constant 0 : index
    %c0_9 = arith.constant 0 : index
    %12 = vector.load %arg2[%11, %c0_8, %c0_9] : memref<50x1x96xf32, #tpu.memory_space<vmem>>, vector<1x1x96xf32>
    %13 = vector.shape_cast %12 : vector<1x1x96xf32> to vector<1x96xf32>
    %c2_10 = arith.constant 2 : index
    %c0_11 = arith.constant 0 : index
    %14 = vector.load %arg7[%c2_10, %c0_11] : memref<64x96xf32, #tpu.memory_space<vmem>>, vector<1x96xf32>
    tpu.vector_store %arg7[%c2_10, %c0_11], %13 {strides = array<i32>} : memref<64x96xf32, #tpu.memory_space<vmem>>, vector<1x96xf32>,
    %c3 = arith.constant 3 : index
    %15 = memref.load %arg0[%c3] : memref<64xi32, #tpu.memory_space<smem>>
    %16 = arith.index_cast %15 : i32 to index
    %c0_12 = arith.constant 0 : index
    %c0_13 = arith.constant 0 : index
    %17 = vector.load %arg2[%16, %c0_12, %c0_13] : memref<50x1x96xf32, #tpu.memory_space<vmem>>, vector<1x1x96xf32>
    %18 = vector.shape_cast %17 : vector<1x1x96xf32> to vector<1x96xf32>
    %c3_14 = arith.constant 3 : index
    %c0_15 = arith.constant 0 : index
    %19 = vector.load %arg7[%c3_14, %c0_15] : memref<64x96xf32, #tpu.memory_space<vmem>>, vector<1x96xf32>
    tpu.vector_store %arg7[%c3_14, %c0_15], %18 {strides = array<i32>} : memref<64x96xf32, #tpu.memory_space<vmem>>, vector<1x96xf32>,
    %c4 = arith.constant 4 : index
    %20 = memref.load %arg0[%c4] : memref<64xi32, #tpu.memory_space<smem>>
    %21 = arith.index_cast %20 : i32 to index
    %c0_16 = arith.constant 0 : index
    %c0_17 = arith.constant 0 : index
    %22 = vector.load %arg2[%21, %c0_16, %c0_17] : memref<50x1x96xf32, #tpu.memory_space<vmem>>, vector<1x1x96xf32>
    %23 = vector.shape_cast %22 : vector<1x1x96xf32> to vector<1x96xf32>
    %c4_18 = arith.constant 4 : index
    %c0_19 = arith.constant 0 : index
    %24 = vector.load %arg7[%c4_18, %c0_19] : memref<64x96xf32, #tpu.memory_space<vmem>>, vector<1x96xf32>
    tpu.vector_store %arg7[%c4_18, %c0_19], %23 {strides = array<i32>} : memref<64x96xf32, #tpu.memory_space<vmem>>, vector<1x96xf32>,
    %c5 = arith.constant 5 : index
    %25 = memref.load %arg0[%c5] : memref<64xi32, #tpu.memory_space<smem>>
    %26 = arith.index_cast %25 : i32 to index
    %c0_20 = arith.constant 0 : index
    %c0_21 = arith.constant 0 : index
    %27 = vector.load %arg2[%26, %c0_20, %c0_21] : memref<50x1x96xf32, #tpu.memory_space<vmem>>, vector<1x1x96xf32>
    %28 = vector.shape_cast %27 : vector<1x1x96xf32> to vector<1x96xf32>
    %c5_22 = arith.constant 5 : index
    %c0_23 = arith.constant 0 : index
    %29 = vector.load %arg7[%c5_22, %c0_23] : memref<64x96xf32, #tpu.memory_space<vmem>>, vector<1x96xf32>
    tpu.vector_store %arg7[%c5_22, %c0_23], %28 {strides = array<i32>} : memref<64x96xf32, #tpu.memory_space<vmem>>, vector<1x96xf32>,
    %c6 = arith.constant 6 : index
    %30 = memref.load %arg0[%c6] : memref<64xi32, #tpu.memory_space<smem>>
    %31 = arith.index_cast %30 : i32 to index
    %c0_24 = arith.constant 0 : index
    %c0_25 = arith.constant 0 : index
    %32 = vector.load %arg2[%31, %c0_24, %c0_25] : memref<50x1x96xf32, #tpu.memory_space<vmem>>, vector<1x1x96xf32>
    %33 = vector.shape_cast %32 : vector<1x1x96xf32> to vector<1x96xf32>
    %c6_26 = arith.constant 6 : index
    %c0_27 = arith.constant 0 : index
    %34 = vector.load %arg7[%c6_26, %c0_27] : memref<64x96xf32, #tpu.memory_space<vmem>>, vector<1x96xf32>
    tpu.vector_store %arg7[%c6_26, %c0_27], %33 {strides = array<i32>} : memref<64x96xf32, #tpu.memory_space<vmem>>, vector<1x96xf32>,
    %c7 = arith.constant 7 : index
    %35 = memref.load %arg0[%c7] : memref<64xi32, #tpu.memory_space<smem>>
    %36 = arith.index_cast %35 : i32 to index
    %c0_28 = arith.constant 0 : index
    %c0_29 = arith.constant 0 : index
    %37 = vector.load %arg2[%36, %c0_28, %c0_29] : memref<50x1x96xf32, #tpu.memory_space<vmem>>, vector<1x1x96xf32>
    %38 = vector.shape_cast %37 : vector<1x1x96xf32> to vector<1x96xf32>
    %c7_30 = arith.constant 7 : index
    %c0_31 = arith.constant 0 : index
    %39 = vector.load %arg7[%c7_30, %c0_31] : memref<64x96xf32, #tpu.memory_space<vmem>>, vector<1x96xf32>
    tpu.vector_store %arg7[%c7_30, %c0_31], %38 {strides = array<i32>} : memref<64x96xf32, #tpu.memory_space<vmem>>, vector<1x96xf32>,
    %c8 = arith.constant 8 : index
    %40 = memref.load %arg0[%c8] : memref<64xi32, #tpu.memory_space<smem>>
    %41 = arith.index_cast %40 : i32 to index
    %c0_32 = arith.constant 0 : index
    %c0_33 = arith.constant 0 : index
    %42 = vector.load %arg2[%41, %c0_32, %c0_33] : memref<50x1x96xf32, #tpu.memory_space<vmem>>, vector<1x1x96xf32>
    %43 = vector.shape_cast %42 : vector<1x1x96xf32> to vector<1x96xf32>
    %c8_34 = arith.constant 8 : index
    %c0_35 = arith.constant 0 : index
    %44 = vector.load %arg7[%c8_34, %c0_35] : memref<64x96xf32, #tpu.memory_space<vmem>>, vector<1x96xf32>
    tpu.vector_store %arg7[%c8_34, %c0_35], %43 {strides = array<i32>} : memref<64x96xf32, #tpu.memory_space<vmem>>, vector<1x96xf32>,
    %c9 = arith.constant 9 : index
    %45 = memref.load %arg0[%c9] : memref<64xi32, #tpu.memory_space<smem>>
    %46 = arith.index_cast %45 : i32 to index
    %c0_36 = arith.constant 0 : index
    %c0_37 = arith.constant 0 : index
    %47 = vector.load %arg2[%46, %c0_36, %c0_37] : memref<50x1x96xf32, #tpu.memory_space<vmem>>, vector<1x1x96xf32>
    %48 = vector.shape_cast %47 : vector<1x1x96xf32> to vector<1x96xf32>
    %c9_38 = arith.constant 9 : index
    %c0_39 = arith.constant 0 : index
    %49 = vector.load %arg7[%c9_38, %c0_39] : memref<64x96xf32, #tpu.memory_space<vmem>>, vector<1x96xf32>
    tpu.vector_store %arg7[%c9_38, %c0_39], %48 {strides = array<i32>} : memref<64x96xf32, #tpu.memory_space<vmem>>, vector<1x96xf32>,
    %c10 = arith.constant 10 : index
    %50 = memref.load %arg0[%c10] : memref<64xi32, #tpu.memory_space<smem>>
    %51 = arith.index_cast %50 : i32 to index
    %c0_40 = arith.constant 0 : index
    %c0_41 = arith.constant 0 : index
    %52 = vector.load %arg2[%51, %c0_40, %c0_41] : memref<50x1x96xf32, #tpu.memory_space<vmem>>, vector<1x1x96xf32>
    %53 = vector.shape_cast %52 : vector<1x1x96xf32> to vector<1x96xf32>
    %c10_42 = arith.constant 10 : index
    %c0_43 = arith.constant 0 : index
    %54 = vector.load %arg7[%c10_42, %c0_43] : memref<64x96xf32, #tpu.memory_space<vmem>>, vector<1x96xf32>
    tpu.vector_store %arg7[%c10_42, %c0_43], %53 {strides = array<i32>} : memref<64x96xf32, #tpu.memory_space<vmem>>, vector<1x96xf32>,
    %c11 = arith.constant 11 : index
    %55 = memref.load %arg0[%c11] : memref<64xi32, #tpu.memory_space<smem>>
    %56 = arith.index_cast %55 : i32 to index
    %c0_44 = arith.constant 0 : index
    %c0_45 = arith.constant 0 : index
    %57 = vector.load %arg2[%56, %c0_44, %c0_45] : memref<50x1x96xf32, #tpu.memory_space<vmem>>, vector<1x1x96xf32>
    %58 = vector.shape_cast %57 : vector<1x1x96xf32> to vector<1x96xf32>
    %c11_46 = arith.constant 11 : index
    %c0_47 = arith.constant 0 : index
    %59 = vector.load %arg7[%c11_46, %c0_47] : memref<64x96xf32, #tpu.memory_space<vmem>>, vector<1x96xf32>
    tpu.vector_store %arg7[%c11_46, %c0_47], %58 {strides = array<i32>} : memref<64x96xf32, #tpu.memory_space<vmem>>, vector<1x96xf32>,
    %c12 = arith.constant 12 : index
    %60 = memref.load %arg0[%c12] : memref<64xi32, #tpu.memory_space<smem>>
    %61 = arith.index_cast %60 : i32 to index
    %c0_48 = arith.constant 0 : index
    %c0_49 = arith.constant 0 : index
    %62 = vector.load %arg2[%61, %c0_48, %c0_49] : memref<50x1x96xf32, #tpu.memory_space<vmem>>, vector<1x1x96xf32>
    %63 = vector.shape_cast %62 : vector<1x1x96xf32> to vector<1x96xf32>
    %c12_50 = arith.constant 12 : index
    %c0_51 = arith.constant 0 : index
    %64 = vector.load %arg7[%c12_50, %c0_51] : memref<64x96xf32, #tpu.memory_space<vmem>>, vector<1x96xf32>
    tpu.vector_store %arg7[%c12_50, %c0_51], %63 {strides = array<i32>} : memref<64x96xf32, #tpu.memory_space<vmem>>, vector<1x96xf32>,
    %c13 = arith.constant 13 : index
    %65 = memref.load %arg0[%c13] : memref<64xi32, #tpu.memory_space<smem>>
    %66 = arith.index_cast %65 : i32 to index
    %c0_52 = arith.constant 0 : index
    %c0_53 = arith.constant 0 : index
    %67 = vector.load %arg2[%66, %c0_52, %c0_53] : memref<50x1x96xf32, #tpu.memory_space<vmem>>, vector<1x1x96xf32>
    %68 = vector.shape_cast %67 : vector<1x1x96xf32> to vector<1x96xf32>
    %c13_54 = arith.constant 13 : index
    %c0_55 = arith.constant 0 : index
    %69 = vector.load %arg7[%c13_54, %c0_55] : memref<64x96xf32, #tpu.memory_space<vmem>>, vector<1x96xf32>
    tpu.vector_store %arg7[%c13_54, %c0_55], %68 {strides = array<i32>} : memref<64x96xf32, #tpu.memory_space<vmem>>, vector<1x96xf32>,
    %c14 = arith.constant 14 : index
    %70 = memref.load %arg0[%c14] : memref<64xi32, #tpu.memory_space<smem>>
    %71 = arith.index_cast %70 : i32 to index
    %c0_56 = arith.constant 0 : index
    %c0_57 = arith.constant 0 : index
    %72 = vector.load %arg2[%71, %c0_56, %c0_57] : memref<50x1x96xf32, #tpu.memory_space<vmem>>, vector<1x1x96xf32>
    %73 = vector.shape_cast %72 : vector<1x1x96xf32> to vector<1x96xf32>
    %c14_58 = arith.constant 14 : index
    %c0_59 = arith.constant 0 : index
    %74 = vector.load %arg7[%c14_58, %c0_59] : memref<64x96xf32, #tpu.memory_space<vmem>>, vector<1x96xf32>
    tpu.vector_store %arg7[%c14_58, %c0_59], %73 {strides = array<i32>} : memref<64x96xf32, #tpu.memory_space<vmem>>, vector<1x96xf32>,
    %c15 = arith.constant 15 : index
    %75 = memref.load %arg0[%c15] : memref<64xi32, #tpu.memory_space<smem>>
    %76 = arith.index_cast %75 : i32 to index
    %c0_60 = arith.constant 0 : index
    %c0_61 = arith.constant 0 : index
    %77 = vector.load %arg2[%76, %c0_60, %c0_61] : memref<50x1x96xf32, #tpu.memory_space<vmem>>, vector<1x1x96xf32>
    %78 = vector.shape_cast %77 : vector<1x1x96xf32> to vector<1x96xf32>
    %c15_62 = arith.constant 15 : index
    %c0_63 = arith.constant 0 : index
    %79 = vector.load %arg7[%c15_62, %c0_63] : memref<64x96xf32, #tpu.memory_space<vmem>>, vector<1x96xf32>
    tpu.vector_store %arg7[%c15_62, %c0_63], %78 {strides = array<i32>} : memref<64x96xf32, #tpu.memory_space<vmem>>, vector<1x96xf32>,
    %c16 = arith.constant 16 : index
    %80 = memref.load %arg0[%c16] : memref<64xi32, #tpu.memory_space<smem>>
    %81 = arith.index_cast %80 : i32 to index
    %c0_64 = arith.constant 0 : index
    %c0_65 = arith.constant 0 : index
    %82 = vector.load %arg2[%81, %c0_64, %c0_65] : memref<50x1x96xf32, #tpu.memory_space<vmem>>, vector<1x1x96xf32>
    %83 = vector.shape_cast %82 : vector<1x1x96xf32> to vector<1x96xf32>
    %c16_66 = arith.constant 16 : index
    %c0_67 = arith.constant 0 : index
    %84 = vector.load %arg7[%c16_66, %c0_67] : memref<64x96xf32, #tpu.memory_space<vmem>>, vector<1x96xf32>
    tpu.vector_store %arg7[%c16_66, %c0_67], %83 {strides = array<i32>} : memref<64x96xf32, #tpu.memory_space<vmem>>, vector<1x96xf32>,
    %c17 = arith.constant 17 : index
    %85 = memref.load %arg0[%c17] : memref<64xi32, #tpu.memory_space<smem>>
    %86 = arith.index_cast %85 : i32 to index
    %c0_68 = arith.constant 0 : index
    %c0_69 = arith.constant 0 : index
    %87 = vector.load %arg2[%86, %c0_68, %c0_69] : memref<50x1x96xf32, #tpu.memory_space<vmem>>, vector<1x1x96xf32>
    %88 = vector.shape_cast %87 : vector<1x1x96xf32> to vector<1x96xf32>
    %c17_70 = arith.constant 17 : index
    %c0_71 = arith.constant 0 : index
    %89 = vector.load %arg7[%c17_70, %c0_71] : memref<64x96xf32, #tpu.memory_space<vmem>>, vector<1x96xf32>
    tpu.vector_store %arg7[%c17_70, %c0_71], %88 {strides = array<i32>} : memref<64x96xf32, #tpu.memory_space<vmem>>, vector<1x96xf32>,
    %c18 = arith.constant 18 : index
    %90 = memref.load %arg0[%c18] : memref<64xi32, #tpu.memory_space<smem>>
    %91 = arith.index_cast %90 : i32 to index
    %c0_72 = arith.constant 0 : index
    %c0_73 = arith.constant 0 : index
    %92 = vector.load %arg2[%91, %c0_72, %c0_73] : memref<50x1x96xf32, #tpu.memory_space<vmem>>, vector<1x1x96xf32>
    %93 = vector.shape_cast %92 : vector<1x1x96xf32> to vector<1x96xf32>
    %c18_74 = arith.constant 18 : index
    %c0_75 = arith.constant 0 : index
    %94 = vector.load %arg7[%c18_74, %c0_75] : memref<64x96xf32, #tpu.memory_space<vmem>>, vector<1x96xf32>
    tpu.vector_store %arg7[%c18_74, %c0_75], %93 {strides = array<i32>} : memref<64x96xf32, #tpu.memory_space<vmem>>, vector<1x96xf32>,
    %c19 = arith.constant 19 : index
    %95 = memref.load %arg0[%c19] : memref<64xi32, #tpu.memory_space<smem>>
    %96 = arith.index_cast %95 : i32 to index
    %c0_76 = arith.constant 0 : index
    %c0_77 = arith.constant 0 : index
    %97 = vector.load %arg2[%96, %c0_76, %c0_77] : memref<50x1x96xf32, #tpu.memory_space<vmem>>, vector<1x1x96xf32>
    %98 = vector.shape_cast %97 : vector<1x1x96xf32> to vector<1x96xf32>
    %c19_78 = arith.constant 19 : index
    %c0_79 = arith.constant 0 : index
    %99 = vector.load %arg7[%c19_78, %c0_79] : memref<64x96xf32, #tpu.memory_space<vmem>>, vector<1x96xf32>
    tpu.vector_store %arg7[%c19_78, %c0_79], %98 {strides = array<i32>} : memref<64x96xf32, #tpu.memory_space<vmem>>, vector<1x96xf32>,
    %c20 = arith.constant 20 : index
    %100 = memref.load %arg0[%c20] : memref<64xi32, #tpu.memory_space<smem>>
    %101 = arith.index_cast %100 : i32 to index
    %c0_80 = arith.constant 0 : index
    %c0_81 = arith.constant 0 : index
    %102 = vector.load %arg2[%101, %c0_80, %c0_81] : memref<50x1x96xf32, #tpu.memory_space<vmem>>, vector<1x1x96xf32>
    %103 = vector.shape_cast %102 : vector<1x1x96xf32> to vector<1x96xf32>
    %c20_82 = arith.constant 20 : index
    %c0_83 = arith.constant 0 : index
    %104 = vector.load %arg7[%c20_82, %c0_83] : memref<64x96xf32, #tpu.memory_space<vmem>>, vector<1x96xf32>
    tpu.vector_store %arg7[%c20_82, %c0_83], %103 {strides = array<i32>} : memref<64x96xf32, #tpu.memory_space<vmem>>, vector<1x96xf32>,
    %c21 = arith.constant 21 : index
    %105 = memref.load %arg0[%c21] : memref<64xi32, #tpu.memory_space<smem>>
    %106 = arith.index_cast %105 : i32 to index
    %c0_84 = arith.constant 0 : index
    %c0_85 = arith.constant 0 : index
    %107 = vector.load %arg2[%106, %c0_84, %c0_85] : memref<50x1x96xf32, #tpu.memory_space<vmem>>, vector<1x1x96xf32>
    %108 = vector.shape_cast %107 : vector<1x1x96xf32> to vector<1x96xf32>
    %c21_86 = arith.constant 21 : index
    %c0_87 = arith.constant 0 : index
    %109 = vector.load %arg7[%c21_86, %c0_87] : memref<64x96xf32, #tpu.memory_space<vmem>>, vector<1x96xf32>
    tpu.vector_store %arg7[%c21_86, %c0_87], %108 {strides = array<i32>} : memref<64x96xf32, #tpu.memory_space<vmem>>, vector<1x96xf32>,
    %c22 = arith.constant 22 : index
    %110 = memref.load %arg0[%c22] : memref<64xi32, #tpu.memory_space<smem>>
    %111 = arith.index_cast %110 : i32 to index
    %c0_88 = arith.constant 0 : index
    %c0_89 = arith.constant 0 : index
    %112 = vector.load %arg2[%111, %c0_88, %c0_89] : memref<50x1x96xf32, #tpu.memory_space<vmem>>, vector<1x1x96xf32>
    %113 = vector.shape_cast %112 : vector<1x1x96xf32> to vector<1x96xf32>
    %c22_90 = arith.constant 22 : index
    %c0_91 = arith.constant 0 : index
    %114 = vector.load %arg7[%c22_90, %c0_91] : memref<64x96xf32, #tpu.memory_space<vmem>>, vector<1x96xf32>
    tpu.vector_store %arg7[%c22_90, %c0_91], %113 {strides = array<i32>} : memref<64x96xf32, #tpu.memory_space<vmem>>, vector<1x96xf32>,
    %c23 = arith.constant 23 : index
    %115 = memref.load %arg0[%c23] : memref<64xi32, #tpu.memory_space<smem>>
    %116 = arith.index_cast %115 : i32 to index
    %c0_92 = arith.constant 0 : index
    %c0_93 = arith.constant 0 : index
    %117 = vector.load %arg2[%116, %c0_92, %c0_93] : memref<50x1x96xf32, #tpu.memory_space<vmem>>, vector<1x1x96xf32>
    %118 = vector.shape_cast %117 : vector<1x1x96xf32> to vector<1x96xf32>
    %c23_94 = arith.constant 23 : index
    %c0_95 = arith.constant 0 : index
    %119 = vector.load %arg7[%c23_94, %c0_95] : memref<64x96xf32, #tpu.memory_space<vmem>>, vector<1x96xf32>
    tpu.vector_store %arg7[%c23_94, %c0_95], %118 {strides = array<i32>} : memref<64x96xf32, #tpu.memory_space<vmem>>, vector<1x96xf32>,
    %c24 = arith.constant 24 : index
    %120 = memref.load %arg0[%c24] : memref<64xi32, #tpu.memory_space<smem>>
    %121 = arith.index_cast %120 : i32 to index
    %c0_96 = arith.constant 0 : index
    %c0_97 = arith.constant 0 : index
    %122 = vector.load %arg2[%121, %c0_96, %c0_97] : memref<50x1x96xf32, #tpu.memory_space<vmem>>, vector<1x1x96xf32>
    %123 = vector.shape_cast %122 : vector<1x1x96xf32> to vector<1x96xf32>
    %c24_98 = arith.constant 24 : index
    %c0_99 = arith.constant 0 : index
    %124 = vector.load %arg7[%c24_98, %c0_99] : memref<64x96xf32, #tpu.memory_space<vmem>>, vector<1x96xf32>
    tpu.vector_store %arg7[%c24_98, %c0_99], %123 {strides = array<i32>} : memref<64x96xf32, #tpu.memory_space<vmem>>, vector<1x96xf32>,
    %c25 = arith.constant 25 : index
    %125 = memref.load %arg0[%c25] : memref<64xi32, #tpu.memory_space<smem>>
    %126 = arith.index_cast %125 : i32 to index
    %c0_100 = arith.constant 0 : index
    %c0_101 = arith.constant 0 : index
    %127 = vector.load %arg2[%126, %c0_100, %c0_101] : memref<50x1x96xf32, #tpu.memory_space<vmem>>, vector<1x1x96xf32>
    %128 = vector.shape_cast %127 : vector<1x1x96xf32> to vector<1x96xf32>
    %c25_102 = arith.constant 25 : index
    %c0_103 = arith.constant 0 : index
    %129 = vector.load %arg7[%c25_102, %c0_103] : memref<64x96xf32, #tpu.memory_space<vmem>>, vector<1x96xf32>
    tpu.vector_store %arg7[%c25_102, %c0_103], %128 {strides = array<i32>} : memref<64x96xf32, #tpu.memory_space<vmem>>, vector<1x96xf32>,
    %c26 = arith.constant 26 : index
    %130 = memref.load %arg0[%c26] : memref<64xi32, #tpu.memory_space<smem>>
    %131 = arith.index_cast %130 : i32 to index
    %c0_104 = arith.constant 0 : index
    %c0_105 = arith.constant 0 : index
    %132 = vector.load %arg2[%131, %c0_104, %c0_105] : memref<50x1x96xf32, #tpu.memory_space<vmem>>, vector<1x1x96xf32>
    %133 = vector.shape_cast %132 : vector<1x1x96xf32> to vector<1x96xf32>
    %c26_106 = arith.constant 26 : index
    %c0_107 = arith.constant 0 : index
    %134 = vector.load %arg7[%c26_106, %c0_107] : memref<64x96xf32, #tpu.memory_space<vmem>>, vector<1x96xf32>
    tpu.vector_store %arg7[%c26_106, %c0_107], %133 {strides = array<i32>} : memref<64x96xf32, #tpu.memory_space<vmem>>, vector<1x96xf32>,
    %c27 = arith.constant 27 : index
    %135 = memref.load %arg0[%c27] : memref<64xi32, #tpu.memory_space<smem>>
    %136 = arith.index_cast %135 : i32 to index
    %c0_108 = arith.constant 0 : index
    %c0_109 = arith.constant 0 : index
    %137 = vector.load %arg2[%136, %c0_108, %c0_109] : memref<50x1x96xf32, #tpu.memory_space<vmem>>, vector<1x1x96xf32>
    %138 = vector.shape_cast %137 : vector<1x1x96xf32> to vector<1x96xf32>
    %c27_110 = arith.constant 27 : index
    %c0_111 = arith.constant 0 : index
    %139 = vector.load %arg7[%c27_110, %c0_111] : memref<64x96xf32, #tpu.memory_space<vmem>>, vector<1x96xf32>
    tpu.vector_store %arg7[%c27_110, %c0_111], %138 {strides = array<i32>} : memref<64x96xf32, #tpu.memory_space<vmem>>, vector<1x96xf32>,
    %c28 = arith.constant 28 : index
    %140 = memref.load %arg0[%c28] : memref<64xi32, #tpu.memory_space<smem>>
    %141 = arith.index_cast %140 : i32 to index
    %c0_112 = arith.constant 0 : index
    %c0_113 = arith.constant 0 : index
    %142 = vector.load %arg2[%141, %c0_112, %c0_113] : memref<50x1x96xf32, #tpu.memory_space<vmem>>, vector<1x1x96xf32>
    %143 = vector.shape_cast %142 : vector<1x1x96xf32> to vector<1x96xf32>
    %c28_114 = arith.constant 28 : index
    %c0_115 = arith.constant 0 : index
    %144 = vector.load %arg7[%c28_114, %c0_115] : memref<64x96xf32, #tpu.memory_space<vmem>>, vector<1x96xf32>
    tpu.vector_store %arg7[%c28_114, %c0_115], %143 {strides = array<i32>} : memref<64x96xf32, #tpu.memory_space<vmem>>, vector<1x96xf32>,
    %c29 = arith.constant 29 : index
    %145 = memref.load %arg0[%c29] : memref<64xi32, #tpu.memory_space<smem>>
    %146 = arith.index_cast %145 : i32 to index
    %c0_116 = arith.constant 0 : index
    %c0_117 = arith.constant 0 : index
    %147 = vector.load %arg2[%146, %c0_116, %c0_117] : memref<50x1x96xf32, #tpu.memory_space<vmem>>, vector<1x1x96xf32>
    %148 = vector.shape_cast %147 : vector<1x1x96xf32> to vector<1x96xf32>
    %c29_118 = arith.constant 29 : index
    %c0_119 = arith.constant 0 : index
    %149 = vector.load %arg7[%c29_118, %c0_119] : memref<64x96xf32, #tpu.memory_space<vmem>>, vector<1x96xf32>
    tpu.vector_store %arg7[%c29_118, %c0_119], %148 {strides = array<i32>} : memref<64x96xf32, #tpu.memory_space<vmem>>, vector<1x96xf32>,
    %c30 = arith.constant 30 : index
    %150 = memref.load %arg0[%c30] : memref<64xi32, #tpu.memory_space<smem>>
    %151 = arith.index_cast %150 : i32 to index
    %c0_120 = arith.constant 0 : index
    %c0_121 = arith.constant 0 : index
    %152 = vector.load %arg2[%151, %c0_120, %c0_121] : memref<50x1x96xf32, #tpu.memory_space<vmem>>, vector<1x1x96xf32>
    %153 = vector.shape_cast %152 : vector<1x1x96xf32> to vector<1x96xf32>
    %c30_122 = arith.constant 30 : index
    %c0_123 = arith.constant 0 : index
    %154 = vector.load %arg7[%c30_122, %c0_123] : memref<64x96xf32, #tpu.memory_space<vmem>>, vector<1x96xf32>
    tpu.vector_store %arg7[%c30_122, %c0_123], %153 {strides = array<i32>} : memref<64x96xf32, #tpu.memory_space<vmem>>, vector<1x96xf32>,
    %c31 = arith.constant 31 : index
    %155 = memref.load %arg0[%c31] : memref<64xi32, #tpu.memory_space<smem>>
    %156 = arith.index_cast %155 : i32 to index
    %c0_124 = arith.constant 0 : index
    %c0_125 = arith.constant 0 : index
    %157 = vector.load %arg2[%156, %c0_124, %c0_125] : memref<50x1x96xf32, #tpu.memory_space<vmem>>, vector<1x1x96xf32>
    %158 = vector.shape_cast %157 : vector<1x1x96xf32> to vector<1x96xf32>
    %c31_126 = arith.constant 31 : index
    %c0_127 = arith.constant 0 : index
    %159 = vector.load %arg7[%c31_126, %c0_127] : memref<64x96xf32, #tpu.memory_space<vmem>>, vector<1x96xf32>
    tpu.vector_store %arg7[%c31_126, %c0_127], %158 {strides = array<i32>} : memref<64x96xf32, #tpu.memory_space<vmem>>, vector<1x96xf32>,
    %c32 = arith.constant 32 : index
    %160 = memref.load %arg0[%c32] : memref<64xi32, #tpu.memory_space<smem>>
    %161 = arith.index_cast %160 : i32 to index
    %c0_128 = arith.constant 0 : index
    %c0_129 = arith.constant 0 : index
    %162 = vector.load %arg2[%161, %c0_128, %c0_129] : memref<50x1x96xf32, #tpu.memory_space<vmem>>, vector<1x1x96xf32>
    %163 = vector.shape_cast %162 : vector<1x1x96xf32> to vector<1x96xf32>
    %c32_130 = arith.constant 32 : index
    %c0_131 = arith.constant 0 : index
    %164 = vector.load %arg7[%c32_130, %c0_131] : memref<64x96xf32, #tpu.memory_space<vmem>>, vector<1x96xf32>
    tpu.vector_store %arg7[%c32_130, %c0_131], %163 {strides = array<i32>} : memref<64x96xf32, #tpu.memory_space<vmem>>, vector<1x96xf32>,
    %c33 = arith.constant 33 : index
    %165 = memref.load %arg0[%c33] : memref<64xi32, #tpu.memory_space<smem>>
    %166 = arith.index_cast %165 : i32 to index
    %c0_132 = arith.constant 0 : index
    %c0_133 = arith.constant 0 : index
    %167 = vector.load %arg2[%166, %c0_132, %c0_133] : memref<50x1x96xf32, #tpu.memory_space<vmem>>, vector<1x1x96xf32>
    %168 = vector.shape_cast %167 : vector<1x1x96xf32> to vector<1x96xf32>
    %c33_134 = arith.constant 33 : index
    %c0_135 = arith.constant 0 : index
    %169 = vector.load %arg7[%c33_134, %c0_135] : memref<64x96xf32, #tpu.memory_space<vmem>>, vector<1x96xf32>
    tpu.vector_store %arg7[%c33_134, %c0_135], %168 {strides = array<i32>} : memref<64x96xf32, #tpu.memory_space<vmem>>, vector<1x96xf32>,
    %c34 = arith.constant 34 : index
    %170 = memref.load %arg0[%c34] : memref<64xi32, #tpu.memory_space<smem>>
    %171 = arith.index_cast %170 : i32 to index
    %c0_136 = arith.constant 0 : index
    %c0_137 = arith.constant 0 : index
    %172 = vector.load %arg2[%171, %c0_136, %c0_137] : memref<50x1x96xf32, #tpu.memory_space<vmem>>, vector<1x1x96xf32>
    %173 = vector.shape_cast %172 : vector<1x1x96xf32> to vector<1x96xf32>
    %c34_138 = arith.constant 34 : index
    %c0_139 = arith.constant 0 : index
    %174 = vector.load %arg7[%c34_138, %c0_139] : memref<64x96xf32, #tpu.memory_space<vmem>>, vector<1x96xf32>
    tpu.vector_store %arg7[%c34_138, %c0_139], %173 {strides = array<i32>} : memref<64x96xf32, #tpu.memory_space<vmem>>, vector<1x96xf32>,
    %c35 = arith.constant 35 : index
    %175 = memref.load %arg0[%c35] : memref<64xi32, #tpu.memory_space<smem>>
    %176 = arith.index_cast %175 : i32 to index
    %c0_140 = arith.constant 0 : index
    %c0_141 = arith.constant 0 : index
    %177 = vector.load %arg2[%176, %c0_140, %c0_141] : memref<50x1x96xf32, #tpu.memory_space<vmem>>, vector<1x1x96xf32>
    %178 = vector.shape_cast %177 : vector<1x1x96xf32> to vector<1x96xf32>
    %c35_142 = arith.constant 35 : index
    %c0_143 = arith.constant 0 : index
    %179 = vector.load %arg7[%c35_142, %c0_143] : memref<64x96xf32, #tpu.memory_space<vmem>>, vector<1x96xf32>
    tpu.vector_store %arg7[%c35_142, %c0_143], %178 {strides = array<i32>} : memref<64x96xf32, #tpu.memory_space<vmem>>, vector<1x96xf32>,
    %c36 = arith.constant 36 : index
    %180 = memref.load %arg0[%c36] : memref<64xi32, #tpu.memory_space<smem>>
    %181 = arith.index_cast %180 : i32 to index
    %c0_144 = arith.constant 0 : index
    %c0_145 = arith.constant 0 : index
    %182 = vector.load %arg2[%181, %c0_144, %c0_145] : memref<50x1x96xf32, #tpu.memory_space<vmem>>, vector<1x1x96xf32>
    %183 = vector.shape_cast %182 : vector<1x1x96xf32> to vector<1x96xf32>
    %c36_146 = arith.constant 36 : index
    %c0_147 = arith.constant 0 : index
    %184 = vector.load %arg7[%c36_146, %c0_147] : memref<64x96xf32, #tpu.memory_space<vmem>>, vector<1x96xf32>
    tpu.vector_store %arg7[%c36_146, %c0_147], %183 {strides = array<i32>} : memref<64x96xf32, #tpu.memory_space<vmem>>, vector<1x96xf32>,
    %c37 = arith.constant 37 : index
    %185 = memref.load %arg0[%c37] : memref<64xi32, #tpu.memory_space<smem>>
    %186 = arith.index_cast %185 : i32 to index
    %c0_148 = arith.constant 0 : index
    %c0_149 = arith.constant 0 : index
    %187 = vector.load %arg2[%186, %c0_148, %c0_149] : memref<50x1x96xf32, #tpu.memory_space<vmem>>, vector<1x1x96xf32>
    %188 = vector.shape_cast %187 : vector<1x1x96xf32> to vector<1x96xf32>
    %c37_150 = arith.constant 37 : index
    %c0_151 = arith.constant 0 : index
    %189 = vector.load %arg7[%c37_150, %c0_151] : memref<64x96xf32, #tpu.memory_space<vmem>>, vector<1x96xf32>
    tpu.vector_store %arg7[%c37_150, %c0_151], %188 {strides = array<i32>} : memref<64x96xf32, #tpu.memory_space<vmem>>, vector<1x96xf32>,
    %c38 = arith.constant 38 : index
    %190 = memref.load %arg0[%c38] : memref<64xi32, #tpu.memory_space<smem>>
    %191 = arith.index_cast %190 : i32 to index
    %c0_152 = arith.constant 0 : index
    %c0_153 = arith.constant 0 : index
    %192 = vector.load %arg2[%191, %c0_152, %c0_153] : memref<50x1x96xf32, #tpu.memory_space<vmem>>, vector<1x1x96xf32>
    %193 = vector.shape_cast %192 : vector<1x1x96xf32> to vector<1x96xf32>
    %c38_154 = arith.constant 38 : index
    %c0_155 = arith.constant 0 : index
    %194 = vector.load %arg7[%c38_154, %c0_155] : memref<64x96xf32, #tpu.memory_space<vmem>>, vector<1x96xf32>
    tpu.vector_store %arg7[%c38_154, %c0_155], %193 {strides = array<i32>} : memref<64x96xf32, #tpu.memory_space<vmem>>, vector<1x96xf32>,
    %c39 = arith.constant 39 : index
    %195 = memref.load %arg0[%c39] : memref<64xi32, #tpu.memory_space<smem>>
    %196 = arith.index_cast %195 : i32 to index
    %c0_156 = arith.constant 0 : index
    %c0_157 = arith.constant 0 : index
    %197 = vector.load %arg2[%196, %c0_156, %c0_157] : memref<50x1x96xf32, #tpu.memory_space<vmem>>, vector<1x1x96xf32>
    %198 = vector.shape_cast %197 : vector<1x1x96xf32> to vector<1x96xf32>
    %c39_158 = arith.constant 39 : index
    %c0_159 = arith.constant 0 : index
    %199 = vector.load %arg7[%c39_158, %c0_159] : memref<64x96xf32, #tpu.memory_space<vmem>>, vector<1x96xf32>
    tpu.vector_store %arg7[%c39_158, %c0_159], %198 {strides = array<i32>} : memref<64x96xf32, #tpu.memory_space<vmem>>, vector<1x96xf32>,
    %c40 = arith.constant 40 : index
    %200 = memref.load %arg0[%c40] : memref<64xi32, #tpu.memory_space<smem>>
    %201 = arith.index_cast %200 : i32 to index
    %c0_160 = arith.constant 0 : index
    %c0_161 = arith.constant 0 : index
    %202 = vector.load %arg2[%201, %c0_160, %c0_161] : memref<50x1x96xf32, #tpu.memory_space<vmem>>, vector<1x1x96xf32>
    %203 = vector.shape_cast %202 : vector<1x1x96xf32> to vector<1x96xf32>
    %c40_162 = arith.constant 40 : index
    %c0_163 = arith.constant 0 : index
    %204 = vector.load %arg7[%c40_162, %c0_163] : memref<64x96xf32, #tpu.memory_space<vmem>>, vector<1x96xf32>
    tpu.vector_store %arg7[%c40_162, %c0_163], %203 {strides = array<i32>} : memref<64x96xf32, #tpu.memory_space<vmem>>, vector<1x96xf32>,
    %c41 = arith.constant 41 : index
    %205 = memref.load %arg0[%c41] : memref<64xi32, #tpu.memory_space<smem>>
    %206 = arith.index_cast %205 : i32 to index
    %c0_164 = arith.constant 0 : index
    %c0_165 = arith.constant 0 : index
    %207 = vector.load %arg2[%206, %c0_164, %c0_165] : memref<50x1x96xf32, #tpu.memory_space<vmem>>, vector<1x1x96xf32>
    %208 = vector.shape_cast %207 : vector<1x1x96xf32> to vector<1x96xf32>
    %c41_166 = arith.constant 41 : index
    %c0_167 = arith.constant 0 : index
    %209 = vector.load %arg7[%c41_166, %c0_167] : memref<64x96xf32, #tpu.memory_space<vmem>>, vector<1x96xf32>
    tpu.vector_store %arg7[%c41_166, %c0_167], %208 {strides = array<i32>} : memref<64x96xf32, #tpu.memory_space<vmem>>, vector<1x96xf32>,
    %c42 = arith.constant 42 : index
    %210 = memref.load %arg0[%c42] : memref<64xi32, #tpu.memory_space<smem>>
    %211 = arith.index_cast %210 : i32 to index
    %c0_168 = arith.constant 0 : index
    %c0_169 = arith.constant 0 : index
    %212 = vector.load %arg2[%211, %c0_168, %c0_169] : memref<50x1x96xf32, #tpu.memory_space<vmem>>, vector<1x1x96xf32>
    %213 = vector.shape_cast %212 : vector<1x1x96xf32> to vector<1x96xf32>
    %c42_170 = arith.constant 42 : index
    %c0_171 = arith.constant 0 : index
    %214 = vector.load %arg7[%c42_170, %c0_171] : memref<64x96xf32, #tpu.memory_space<vmem>>, vector<1x96xf32>
    tpu.vector_store %arg7[%c42_170, %c0_171], %213 {strides = array<i32>} : memref<64x96xf32, #tpu.memory_space<vmem>>, vector<1x96xf32>,
    %c43 = arith.constant 43 : index
    %215 = memref.load %arg0[%c43] : memref<64xi32, #tpu.memory_space<smem>>
    %216 = arith.index_cast %215 : i32 to index
    %c0_172 = arith.constant 0 : index
    %c0_173 = arith.constant 0 : index
    %217 = vector.load %arg2[%216, %c0_172, %c0_173] : memref<50x1x96xf32, #tpu.memory_space<vmem>>, vector<1x1x96xf32>
    %218 = vector.shape_cast %217 : vector<1x1x96xf32> to vector<1x96xf32>
    %c43_174 = arith.constant 43 : index
    %c0_175 = arith.constant 0 : index
    %219 = vector.load %arg7[%c43_174, %c0_175] : memref<64x96xf32, #tpu.memory_space<vmem>>, vector<1x96xf32>
    tpu.vector_store %arg7[%c43_174, %c0_175], %218 {strides = array<i32>} : memref<64x96xf32, #tpu.memory_space<vmem>>, vector<1x96xf32>,
    %c44 = arith.constant 44 : index
    %220 = memref.load %arg0[%c44] : memref<64xi32, #tpu.memory_space<smem>>
    %221 = arith.index_cast %220 : i32 to index
    %c0_176 = arith.constant 0 : index
    %c0_177 = arith.constant 0 : index
    %222 = vector.load %arg2[%221, %c0_176, %c0_177] : memref<50x1x96xf32, #tpu.memory_space<vmem>>, vector<1x1x96xf32>
    %223 = vector.shape_cast %222 : vector<1x1x96xf32> to vector<1x96xf32>
    %c44_178 = arith.constant 44 : index
    %c0_179 = arith.constant 0 : index
    %224 = vector.load %arg7[%c44_178, %c0_179] : memref<64x96xf32, #tpu.memory_space<vmem>>, vector<1x96xf32>
    tpu.vector_store %arg7[%c44_178, %c0_179], %223 {strides = array<i32>} : memref<64x96xf32, #tpu.memory_space<vmem>>, vector<1x96xf32>,
    %c45 = arith.constant 45 : index
    %225 = memref.load %arg0[%c45] : memref<64xi32, #tpu.memory_space<smem>>
    %226 = arith.index_cast %225 : i32 to index
    %c0_180 = arith.constant 0 : index
    %c0_181 = arith.constant 0 : index
    %227 = vector.load %arg2[%226, %c0_180, %c0_181] : memref<50x1x96xf32, #tpu.memory_space<vmem>>, vector<1x1x96xf32>
    %228 = vector.shape_cast %227 : vector<1x1x96xf32> to vector<1x96xf32>
    %c45_182 = arith.constant 45 : index
    %c0_183 = arith.constant 0 : index
    %229 = vector.load %arg7[%c45_182, %c0_183] : memref<64x96xf32, #tpu.memory_space<vmem>>, vector<1x96xf32>
    tpu.vector_store %arg7[%c45_182, %c0_183], %228 {strides = array<i32>} : memref<64x96xf32, #tpu.memory_space<vmem>>, vector<1x96xf32>,
    %c46 = arith.constant 46 : index
    %230 = memref.load %arg0[%c46] : memref<64xi32, #tpu.memory_space<smem>>
    %231 = arith.index_cast %230 : i32 to index
    %c0_184 = arith.constant 0 : index
    %c0_185 = arith.constant 0 : index
    %232 = vector.load %arg2[%231, %c0_184, %c0_185] : memref<50x1x96xf32, #tpu.memory_space<vmem>>, vector<1x1x96xf32>
    %233 = vector.shape_cast %232 : vector<1x1x96xf32> to vector<1x96xf32>
    %c46_186 = arith.constant 46 : index
    %c0_187 = arith.constant 0 : index
    %234 = vector.load %arg7[%c46_186, %c0_187] : memref<64x96xf32, #tpu.memory_space<vmem>>, vector<1x96xf32>
    tpu.vector_store %arg7[%c46_186, %c0_187], %233 {strides = array<i32>} : memref<64x96xf32, #tpu.memory_space<vmem>>, vector<1x96xf32>,
    %c47 = arith.constant 47 : index
    %235 = memref.load %arg0[%c47] : memref<64xi32, #tpu.memory_space<smem>>
    %236 = arith.index_cast %235 : i32 to index
    %c0_188 = arith.constant 0 : index
    %c0_189 = arith.constant 0 : index
    %237 = vector.load %arg2[%236, %c0_188, %c0_189] : memref<50x1x96xf32, #tpu.memory_space<vmem>>, vector<1x1x96xf32>
    %238 = vector.shape_cast %237 : vector<1x1x96xf32> to vector<1x96xf32>
    %c47_190 = arith.constant 47 : index
    %c0_191 = arith.constant 0 : index
    %239 = vector.load %arg7[%c47_190, %c0_191] : memref<64x96xf32, #tpu.memory_space<vmem>>, vector<1x96xf32>
    tpu.vector_store %arg7[%c47_190, %c0_191], %238 {strides = array<i32>} : memref<64x96xf32, #tpu.memory_space<vmem>>, vector<1x96xf32>,
    %c48 = arith.constant 48 : index
    %240 = memref.load %arg0[%c48] : memref<64xi32, #tpu.memory_space<smem>>
    %241 = arith.index_cast %240 : i32 to index
    %c0_192 = arith.constant 0 : index
    %c0_193 = arith.constant 0 : index
    %242 = vector.load %arg2[%241, %c0_192, %c0_193] : memref<50x1x96xf32, #tpu.memory_space<vmem>>, vector<1x1x96xf32>
    %243 = vector.shape_cast %242 : vector<1x1x96xf32> to vector<1x96xf32>
    %c48_194 = arith.constant 48 : index
    %c0_195 = arith.constant 0 : index
    %244 = vector.load %arg7[%c48_194, %c0_195] : memref<64x96xf32, #tpu.memory_space<vmem>>, vector<1x96xf32>
    tpu.vector_store %arg7[%c48_194, %c0_195], %243 {strides = array<i32>} : memref<64x96xf32, #tpu.memory_space<vmem>>, vector<1x96xf32>,
    %c49 = arith.constant 49 : index
    %245 = memref.load %arg0[%c49] : memref<64xi32, #tpu.memory_space<smem>>
    %246 = arith.index_cast %245 : i32 to index
    %c0_196 = arith.constant 0 : index
    %c0_197 = arith.constant 0 : index
    %247 = vector.load %arg2[%246, %c0_196, %c0_197] : memref<50x1x96xf32, #tpu.memory_space<vmem>>, vector<1x1x96xf32>
    %248 = vector.shape_cast %247 : vector<1x1x96xf32> to vector<1x96xf32>
    %c49_198 = arith.constant 49 : index
    %c0_199 = arith.constant 0 : index
    %249 = vector.load %arg7[%c49_198, %c0_199] : memref<64x96xf32, #tpu.memory_space<vmem>>, vector<1x96xf32>
    tpu.vector_store %arg7[%c49_198, %c0_199], %248 {strides = array<i32>} : memref<64x96xf32, #tpu.memory_space<vmem>>, vector<1x96xf32>,
    %c50 = arith.constant 50 : index
    %250 = memref.load %arg0[%c50] : memref<64xi32, #tpu.memory_space<smem>>
    %251 = arith.index_cast %250 : i32 to index
    %c0_200 = arith.constant 0 : index
    %c0_201 = arith.constant 0 : index
    %252 = vector.load %arg2[%251, %c0_200, %c0_201] : memref<50x1x96xf32, #tpu.memory_space<vmem>>, vector<1x1x96xf32>
    %253 = vector.shape_cast %252 : vector<1x1x96xf32> to vector<1x96xf32>
    %c50_202 = arith.constant 50 : index
    %c0_203 = arith.constant 0 : index
    %254 = vector.load %arg7[%c50_202, %c0_203] : memref<64x96xf32, #tpu.memory_space<vmem>>, vector<1x96xf32>
    tpu.vector_store %arg7[%c50_202, %c0_203], %253 {strides = array<i32>} : memref<64x96xf32, #tpu.memory_space<vmem>>, vector<1x96xf32>,
    %c51 = arith.constant 51 : index
    %255 = memref.load %arg0[%c51] : memref<64xi32, #tpu.memory_space<smem>>
    %256 = arith.index_cast %255 : i32 to index
    %c0_204 = arith.constant 0 : index
    %c0_205 = arith.constant 0 : index
    %257 = vector.load %arg2[%256, %c0_204, %c0_205] : memref<50x1x96xf32, #tpu.memory_space<vmem>>, vector<1x1x96xf32>
    %258 = vector.shape_cast %257 : vector<1x1x96xf32> to vector<1x96xf32>
    %c51_206 = arith.constant 51 : index
    %c0_207 = arith.constant 0 : index
    %259 = vector.load %arg7[%c51_206, %c0_207] : memref<64x96xf32, #tpu.memory_space<vmem>>, vector<1x96xf32>
    tpu.vector_store %arg7[%c51_206, %c0_207], %258 {strides = array<i32>} : memref<64x96xf32, #tpu.memory_space<vmem>>, vector<1x96xf32>,
    %c52 = arith.constant 52 : index
    %260 = memref.load %arg0[%c52] : memref<64xi32, #tpu.memory_space<smem>>
    %261 = arith.index_cast %260 : i32 to index
    %c0_208 = arith.constant 0 : index
    %c0_209 = arith.constant 0 : index
    %262 = vector.load %arg2[%261, %c0_208, %c0_209] : memref<50x1x96xf32, #tpu.memory_space<vmem>>, vector<1x1x96xf32>
    %263 = vector.shape_cast %262 : vector<1x1x96xf32> to vector<1x96xf32>
    %c52_210 = arith.constant 52 : index
    %c0_211 = arith.constant 0 : index
    %264 = vector.load %arg7[%c52_210, %c0_211] : memref<64x96xf32, #tpu.memory_space<vmem>>, vector<1x96xf32>
    tpu.vector_store %arg7[%c52_210, %c0_211], %263 {strides = array<i32>} : memref<64x96xf32, #tpu.memory_space<vmem>>, vector<1x96xf32>,
    %c53 = arith.constant 53 : index
    %265 = memref.load %arg0[%c53] : memref<64xi32, #tpu.memory_space<smem>>
    %266 = arith.index_cast %265 : i32 to index
    %c0_212 = arith.constant 0 : index
    %c0_213 = arith.constant 0 : index
    %267 = vector.load %arg2[%266, %c0_212, %c0_213] : memref<50x1x96xf32, #tpu.memory_space<vmem>>, vector<1x1x96xf32>
    %268 = vector.shape_cast %267 : vector<1x1x96xf32> to vector<1x96xf32>
    %c53_214 = arith.constant 53 : index
    %c0_215 = arith.constant 0 : index
    %269 = vector.load %arg7[%c53_214, %c0_215] : memref<64x96xf32, #tpu.memory_space<vmem>>, vector<1x96xf32>
    tpu.vector_store %arg7[%c53_214, %c0_215], %268 {strides = array<i32>} : memref<64x96xf32, #tpu.memory_space<vmem>>, vector<1x96xf32>,
    %c54 = arith.constant 54 : index
    %270 = memref.load %arg0[%c54] : memref<64xi32, #tpu.memory_space<smem>>
    %271 = arith.index_cast %270 : i32 to index
    %c0_216 = arith.constant 0 : index
    %c0_217 = arith.constant 0 : index
    %272 = vector.load %arg2[%271, %c0_216, %c0_217] : memref<50x1x96xf32, #tpu.memory_space<vmem>>, vector<1x1x96xf32>
    %273 = vector.shape_cast %272 : vector<1x1x96xf32> to vector<1x96xf32>
    %c54_218 = arith.constant 54 : index
    %c0_219 = arith.constant 0 : index
    %274 = vector.load %arg7[%c54_218, %c0_219] : memref<64x96xf32, #tpu.memory_space<vmem>>, vector<1x96xf32>
    tpu.vector_store %arg7[%c54_218, %c0_219], %273 {strides = array<i32>} : memref<64x96xf32, #tpu.memory_space<vmem>>, vector<1x96xf32>,
    %c55 = arith.constant 55 : index
    %275 = memref.load %arg0[%c55] : memref<64xi32, #tpu.memory_space<smem>>
    %276 = arith.index_cast %275 : i32 to index
    %c0_220 = arith.constant 0 : index
    %c0_221 = arith.constant 0 : index
    %277 = vector.load %arg2[%276, %c0_220, %c0_221] : memref<50x1x96xf32, #tpu.memory_space<vmem>>, vector<1x1x96xf32>
    %278 = vector.shape_cast %277 : vector<1x1x96xf32> to vector<1x96xf32>
    %c55_222 = arith.constant 55 : index
    %c0_223 = arith.constant 0 : index
    %279 = vector.load %arg7[%c55_222, %c0_223] : memref<64x96xf32, #tpu.memory_space<vmem>>, vector<1x96xf32>
    tpu.vector_store %arg7[%c55_222, %c0_223], %278 {strides = array<i32>} : memref<64x96xf32, #tpu.memory_space<vmem>>, vector<1x96xf32>,
    %c56 = arith.constant 56 : index
    %280 = memref.load %arg0[%c56] : memref<64xi32, #tpu.memory_space<smem>>
    %281 = arith.index_cast %280 : i32 to index
    %c0_224 = arith.constant 0 : index
    %c0_225 = arith.constant 0 : index
    %282 = vector.load %arg2[%281, %c0_224, %c0_225] : memref<50x1x96xf32, #tpu.memory_space<vmem>>, vector<1x1x96xf32>
    %283 = vector.shape_cast %282 : vector<1x1x96xf32> to vector<1x96xf32>
    %c56_226 = arith.constant 56 : index
    %c0_227 = arith.constant 0 : index
    %284 = vector.load %arg7[%c56_226, %c0_227] : memref<64x96xf32, #tpu.memory_space<vmem>>, vector<1x96xf32>
    tpu.vector_store %arg7[%c56_226, %c0_227], %283 {strides = array<i32>} : memref<64x96xf32, #tpu.memory_space<vmem>>, vector<1x96xf32>,
    %c57 = arith.constant 57 : index
    %285 = memref.load %arg0[%c57] : memref<64xi32, #tpu.memory_space<smem>>
    %286 = arith.index_cast %285 : i32 to index
    %c0_228 = arith.constant 0 : index
    %c0_229 = arith.constant 0 : index
    %287 = vector.load %arg2[%286, %c0_228, %c0_229] : memref<50x1x96xf32, #tpu.memory_space<vmem>>, vector<1x1x96xf32>
    %288 = vector.shape_cast %287 : vector<1x1x96xf32> to vector<1x96xf32>
    %c57_230 = arith.constant 57 : index
    %c0_231 = arith.constant 0 : index
    %289 = vector.load %arg7[%c57_230, %c0_231] : memref<64x96xf32, #tpu.memory_space<vmem>>, vector<1x96xf32>
    tpu.vector_store %arg7[%c57_230, %c0_231], %288 {strides = array<i32>} : memref<64x96xf32, #tpu.memory_space<vmem>>, vector<1x96xf32>,
    %c58 = arith.constant 58 : index
    %290 = memref.load %arg0[%c58] : memref<64xi32, #tpu.memory_space<smem>>
    %291 = arith.index_cast %290 : i32 to index
    %c0_232 = arith.constant 0 : index
    %c0_233 = arith.constant 0 : index
    %292 = vector.load %arg2[%291, %c0_232, %c0_233] : memref<50x1x96xf32, #tpu.memory_space<vmem>>, vector<1x1x96xf32>
    %293 = vector.shape_cast %292 : vector<1x1x96xf32> to vector<1x96xf32>
    %c58_234 = arith.constant 58 : index
    %c0_235 = arith.constant 0 : index
    %294 = vector.load %arg7[%c58_234, %c0_235] : memref<64x96xf32, #tpu.memory_space<vmem>>, vector<1x96xf32>
    tpu.vector_store %arg7[%c58_234, %c0_235], %293 {strides = array<i32>} : memref<64x96xf32, #tpu.memory_space<vmem>>, vector<1x96xf32>,
    %c59 = arith.constant 59 : index
    %295 = memref.load %arg0[%c59] : memref<64xi32, #tpu.memory_space<smem>>
    %296 = arith.index_cast %295 : i32 to index
    %c0_236 = arith.constant 0 : index
    %c0_237 = arith.constant 0 : index
    %297 = vector.load %arg2[%296, %c0_236, %c0_237] : memref<50x1x96xf32, #tpu.memory_space<vmem>>, vector<1x1x96xf32>
    %298 = vector.shape_cast %297 : vector<1x1x96xf32> to vector<1x96xf32>
    %c59_238 = arith.constant 59 : index
    %c0_239 = arith.constant 0 : index
    %299 = vector.load %arg7[%c59_238, %c0_239] : memref<64x96xf32, #tpu.memory_space<vmem>>, vector<1x96xf32>
    tpu.vector_store %arg7[%c59_238, %c0_239], %298 {strides = array<i32>} : memref<64x96xf32, #tpu.memory_space<vmem>>, vector<1x96xf32>,
    %c60 = arith.constant 60 : index
    %300 = memref.load %arg0[%c60] : memref<64xi32, #tpu.memory_space<smem>>
    %301 = arith.index_cast %300 : i32 to index
    %c0_240 = arith.constant 0 : index
    %c0_241 = arith.constant 0 : index
    %302 = vector.load %arg2[%301, %c0_240, %c0_241] : memref<50x1x96xf32, #tpu.memory_space<vmem>>, vector<1x1x96xf32>
    %303 = vector.shape_cast %302 : vector<1x1x96xf32> to vector<1x96xf32>
    %c60_242 = arith.constant 60 : index
    %c0_243 = arith.constant 0 : index
    %304 = vector.load %arg7[%c60_242, %c0_243] : memref<64x96xf32, #tpu.memory_space<vmem>>, vector<1x96xf32>
    tpu.vector_store %arg7[%c60_242, %c0_243], %303 {strides = array<i32>} : memref<64x96xf32, #tpu.memory_space<vmem>>, vector<1x96xf32>,
    %c61 = arith.constant 61 : index
    %305 = memref.load %arg0[%c61] : memref<64xi32, #tpu.memory_space<smem>>
    %306 = arith.index_cast %305 : i32 to index
    %c0_244 = arith.constant 0 : index
    %c0_245 = arith.constant 0 : index
    %307 = vector.load %arg2[%306, %c0_244, %c0_245] : memref<50x1x96xf32, #tpu.memory_space<vmem>>, vector<1x1x96xf32>
    %308 = vector.shape_cast %307 : vector<1x1x96xf32> to vector<1x96xf32>
    %c61_246 = arith.constant 61 : index
    %c0_247 = arith.constant 0 : index
    %309 = vector.load %arg7[%c61_246, %c0_247] : memref<64x96xf32, #tpu.memory_space<vmem>>, vector<1x96xf32>
    tpu.vector_store %arg7[%c61_246, %c0_247], %308 {strides = array<i32>} : memref<64x96xf32, #tpu.memory_space<vmem>>, vector<1x96xf32>,
    %c62 = arith.constant 62 : index
    %310 = memref.load %arg0[%c62] : memref<64xi32, #tpu.memory_space<smem>>
    %311 = arith.index_cast %310 : i32 to index
    %c0_248 = arith.constant 0 : index
    %c0_249 = arith.constant 0 : index
    %312 = vector.load %arg2[%311, %c0_248, %c0_249] : memref<50x1x96xf32, #tpu.memory_space<vmem>>, vector<1x1x96xf32>
    %313 = vector.shape_cast %312 : vector<1x1x96xf32> to vector<1x96xf32>
    %c62_250 = arith.constant 62 : index
    %c0_251 = arith.constant 0 : index
    %314 = vector.load %arg7[%c62_250, %c0_251] : memref<64x96xf32, #tpu.memory_space<vmem>>, vector<1x96xf32>
    tpu.vector_store %arg7[%c62_250, %c0_251], %313 {strides = array<i32>} : memref<64x96xf32, #tpu.memory_space<vmem>>, vector<1x96xf32>,
    %c63 = arith.constant 63 : index
    %315 = memref.load %arg0[%c63] : memref<64xi32, #tpu.memory_space<smem>>
    %316 = arith.index_cast %315 : i32 to index
    %c0_252 = arith.constant 0 : index
    %c0_253 = arith.constant 0 : index
    %317 = vector.load %arg2[%316, %c0_252, %c0_253] : memref<50x1x96xf32, #tpu.memory_space<vmem>>, vector<1x1x96xf32>
    %318 = vector.shape_cast %317 : vector<1x1x96xf32> to vector<1x96xf32>
    %c63_254 = arith.constant 63 : index
    %c0_255 = arith.constant 0 : index
    %319 = vector.load %arg7[%c63_254, %c0_255] : memref<64x96xf32, #tpu.memory_space<vmem>>, vector<1x96xf32>
    tpu.vector_store %arg7[%c63_254, %c0_255], %318 {strides = array<i32>} : memref<64x96xf32, #tpu.memory_space<vmem>>, vector<1x96xf32>,
    %c0_256 = arith.constant 0 : index
    %c0_257 = arith.constant 0 : index
    %320 = vector.load %arg1[%c0_256, %c0_257] : memref<8x1xi32, #tpu.memory_space<vmem>>, vector<8x1xi32>
    %c0_258 = arith.constant 0 : index
    %c0_259 = arith.constant 0 : index
    %321 = vector.load %arg3[%c0_258, %c0_259] : memref<32x96xf32, #tpu.memory_space<vmem>>, vector<32x96xf32>
    %c0_260 = arith.constant 0 : index
    %c0_261 = arith.constant 0 : index
    %322 = vector.load %arg4[%c0_260, %c0_261] : memref<1x32xf32, #tpu.memory_space<vmem>>, vector<1x32xf32>
    %cst = arith.constant 0.000000e+00 : f32
    %323 = vector.broadcast %cst : f32 to vector<8x32xf32>
    %c0_262 = arith.constant 0 : index
    %c0_263 = arith.constant 0 : index
    %324 = vector.load %arg7[%c0_262, %c0_263] : memref<64x96xf32, #tpu.memory_space<vmem>>, vector<8x96xf32>
    %cst_264 = arith.constant dense<0.000000e+00> : vector<8x96xf32>
    %325 = tpu.matmul %323, %321, %cst_264 {dimension_numbers = #tpu.dot_dimension_numbers<[1], [0], [0], [1], [0, 0, 1, 1], [], []>} : vector<8x32xf32>, vector<32x96xf32>, vector<8x96xf32> -> vector<8x96xf32>
    %326 = vector.extract_strided_slice %324 {offsets = [0, 0], sizes = [8, 64], strides = [1, 1]} : vector<8x96xf32> to vector<8x64xf32>
    %327 = vector.extract_strided_slice %325 {offsets = [0, 0], sizes = [8, 64], strides = [1, 1]} : vector<8x96xf32> to vector<8x64xf32>
    %328 = arith.addf %326, %327 : vector<8x64xf32>
    %329 = arith.negf %328 : vector<8x64xf32>
    %330 = math.exp %329 : vector<8x64xf32>
    %cst_265 = arith.constant 1.000000e+00 : f32
    %331 = vector.broadcast %cst_265 : f32 to vector<8x64xf32>
    %332 = arith.addf %331, %330 : vector<8x64xf32>
    %333 = arith.divf %331, %332 : vector<8x64xf32>
    %334 = vector.extract_strided_slice %333 {offsets = [0, 0], sizes = [8, 32], strides = [1, 1]} : vector<8x64xf32> to vector<8x32xf32>
    %335 = vector.extract_strided_slice %333 {offsets = [0, 32], sizes = [8, 32], strides = [1, 1]} : vector<8x64xf32> to vector<8x32xf32>
    %336 = vector.extract_strided_slice %324 {offsets = [0, 64], sizes = [8, 32], strides = [1, 1]} : vector<8x96xf32> to vector<8x32xf32>
    %337 = vector.extract_strided_slice %325 {offsets = [0, 64], sizes = [8, 32], strides = [1, 1]} : vector<8x96xf32> to vector<8x32xf32>
    %338 = vector.broadcast %322 : vector<1x32xf32> to vector<8x32xf32>
    %339 = arith.addf %337, %338 : vector<8x32xf32>
    %340 = arith.mulf %334, %339 : vector<8x32xf32>
    %341 = arith.addf %336, %340 : vector<8x32xf32>
    %342 = math.tanh %341 : vector<8x32xf32>
    %343 = arith.subf %323, %342 : vector<8x32xf32>
    %344 = arith.mulf %335, %343 : vector<8x32xf32>
    %345 = arith.addf %342, %344 : vector<8x32xf32>
    %c0_i32 = arith.constant 0 : i32
    %346 = vector.broadcast %c0_i32 : i32 to vector<8x1xi32>
    %347 = arith.cmpi sgt, %320, %346 : vector<8x1xi32>
    %348 = vector.shape_cast %347 : vector<8x1xi1> to vector<8x1xi1>
    %349 = vector.broadcast %348 : vector<8x1xi1> to vector<8x32xi1>
    %350 = arith.select %349, %345, %323 : vector<8x32xi1>, vector<8x32xf32>
    %cst_266 = arith.constant 0.000000e+00 : f32
    %351 = vector.shape_cast %347 : vector<8x1xi1> to vector<8x1xi1>
    %352 = vector.broadcast %351 : vector<8x1xi1> to vector<8x32xi1>
    %353 = vector.broadcast %cst_266 : f32 to vector<8x32xf32>
    %354 = arith.select %352, %345, %353 : vector<8x32xi1>, vector<8x32xf32>
    %c0_267 = arith.constant 0 : index
    %c0_268 = arith.constant 0 : index
    %355 = vector.load %arg5[%c0_267, %c0_268] : memref<8x256xf32, #tpu.memory_space<vmem>>, vector<8x32xf32>
    tpu.vector_store %arg5[%c0_267, %c0_268], %354 {strides = array<i32>} : memref<8x256xf32, #tpu.memory_space<vmem>>, vector<8x32xf32>,
    %c8_269 = arith.constant 8 : index
    %c0_270 = arith.constant 0 : index
    %356 = vector.load %arg7[%c8_269, %c0_270] : memref<64x96xf32, #tpu.memory_space<vmem>>, vector<8x96xf32>
    %cst_271 = arith.constant dense<0.000000e+00> : vector<8x96xf32>
    %357 = tpu.matmul %350, %321, %cst_271 {dimension_numbers = #tpu.dot_dimension_numbers<[1], [0], [0], [1], [0, 0, 1, 1], [], []>} : vector<8x32xf32>, vector<32x96xf32>, vector<8x96xf32> -> vector<8x96xf32>
    %358 = vector.extract_strided_slice %356 {offsets = [0, 0], sizes = [8, 64], strides = [1, 1]} : vector<8x96xf32> to vector<8x64xf32>
    %359 = vector.extract_strided_slice %357 {offsets = [0, 0], sizes = [8, 64], strides = [1, 1]} : vector<8x96xf32> to vector<8x64xf32>
    %360 = arith.addf %358, %359 : vector<8x64xf32>
    %361 = arith.negf %360 : vector<8x64xf32>
    %362 = math.exp %361 : vector<8x64xf32>
    %cst_272 = arith.constant 1.000000e+00 : f32
    %363 = vector.broadcast %cst_272 : f32 to vector<8x64xf32>
    %364 = arith.addf %363, %362 : vector<8x64xf32>
    %365 = arith.divf %363, %364 : vector<8x64xf32>
    %366 = vector.extract_strided_slice %365 {offsets = [0, 0], sizes = [8, 32], strides = [1, 1]} : vector<8x64xf32> to vector<8x32xf32>
    %367 = vector.extract_strided_slice %365 {offsets = [0, 32], sizes = [8, 32], strides = [1, 1]} : vector<8x64xf32> to vector<8x32xf32>
    %368 = vector.extract_strided_slice %356 {offsets = [0, 64], sizes = [8, 32], strides = [1, 1]} : vector<8x96xf32> to vector<8x32xf32>
    %369 = vector.extract_strided_slice %357 {offsets = [0, 64], sizes = [8, 32], strides = [1, 1]} : vector<8x96xf32> to vector<8x32xf32>
    %370 = vector.broadcast %322 : vector<1x32xf32> to vector<8x32xf32>
    %371 = arith.addf %369, %370 : vector<8x32xf32>
    %372 = arith.mulf %366, %371 : vector<8x32xf32>
    %373 = arith.addf %368, %372 : vector<8x32xf32>
    %374 = math.tanh %373 : vector<8x32xf32>
    %375 = arith.subf %350, %374 : vector<8x32xf32>
    %376 = arith.mulf %367, %375 : vector<8x32xf32>
    %377 = arith.addf %374, %376 : vector<8x32xf32>
    %c1_i32 = arith.constant 1 : i32
    %378 = vector.broadcast %c1_i32 : i32 to vector<8x1xi32>
    %379 = arith.cmpi sgt, %320, %378 : vector<8x1xi32>
    %380 = vector.shape_cast %379 : vector<8x1xi1> to vector<8x1xi1>
    %381 = vector.broadcast %380 : vector<8x1xi1> to vector<8x32xi1>
    %382 = arith.select %381, %377, %350 : vector<8x32xi1>, vector<8x32xf32>
    %cst_273 = arith.constant 0.000000e+00 : f32
    %383 = vector.shape_cast %379 : vector<8x1xi1> to vector<8x1xi1>
    %384 = vector.broadcast %383 : vector<8x1xi1> to vector<8x32xi1>
    %385 = vector.broadcast %cst_273 : f32 to vector<8x32xf32>
    %386 = arith.select %384, %377, %385 : vector<8x32xi1>, vector<8x32xf32>
    %c0_274 = arith.constant 0 : index
    %c32_275 = arith.constant 32 : index
    %387 = vector.load %arg5[%c0_274, %c32_275] : memref<8x256xf32, #tpu.memory_space<vmem>>, vector<8x32xf32>
    tpu.vector_store %arg5[%c0_274, %c32_275], %386 {strides = array<i32>} : memref<8x256xf32, #tpu.memory_space<vmem>>, vector<8x32xf32>,
    %c16_276 = arith.constant 16 : index
    %c0_277 = arith.constant 0 : index
    %388 = vector.load %arg7[%c16_276, %c0_277] : memref<64x96xf32, #tpu.memory_space<vmem>>, vector<8x96xf32>
    %cst_278 = arith.constant dense<0.000000e+00> : vector<8x96xf32>
    %389 = tpu.matmul %382, %321, %cst_278 {dimension_numbers = #tpu.dot_dimension_numbers<[1], [0], [0], [1], [0, 0, 1, 1], [], []>} : vector<8x32xf32>, vector<32x96xf32>, vector<8x96xf32> -> vector<8x96xf32>
    %390 = vector.extract_strided_slice %388 {offsets = [0, 0], sizes = [8, 64], strides = [1, 1]} : vector<8x96xf32> to vector<8x64xf32>
    %391 = vector.extract_strided_slice %389 {offsets = [0, 0], sizes = [8, 64], strides = [1, 1]} : vector<8x96xf32> to vector<8x64xf32>
    %392 = arith.addf %390, %391 : vector<8x64xf32>
    %393 = arith.negf %392 : vector<8x64xf32>
    %394 = math.exp %393 : vector<8x64xf32>
    %cst_279 = arith.constant 1.000000e+00 : f32
    %395 = vector.broadcast %cst_279 : f32 to vector<8x64xf32>
    %396 = arith.addf %395, %394 : vector<8x64xf32>
    %397 = arith.divf %395, %396 : vector<8x64xf32>
    %398 = vector.extract_strided_slice %397 {offsets = [0, 0], sizes = [8, 32], strides = [1, 1]} : vector<8x64xf32> to vector<8x32xf32>
    %399 = vector.extract_strided_slice %397 {offsets = [0, 32], sizes = [8, 32], strides = [1, 1]} : vector<8x64xf32> to vector<8x32xf32>
    %400 = vector.extract_strided_slice %388 {offsets = [0, 64], sizes = [8, 32], strides = [1, 1]} : vector<8x96xf32> to vector<8x32xf32>
    %401 = vector.extract_strided_slice %389 {offsets = [0, 64], sizes = [8, 32], strides = [1, 1]} : vector<8x96xf32> to vector<8x32xf32>
    %402 = vector.broadcast %322 : vector<1x32xf32> to vector<8x32xf32>
    %403 = arith.addf %401, %402 : vector<8x32xf32>
    %404 = arith.mulf %398, %403 : vector<8x32xf32>
    %405 = arith.addf %400, %404 : vector<8x32xf32>
    %406 = math.tanh %405 : vector<8x32xf32>
    %407 = arith.subf %382, %406 : vector<8x32xf32>
    %408 = arith.mulf %399, %407 : vector<8x32xf32>
    %409 = arith.addf %406, %408 : vector<8x32xf32>
    %c2_i32 = arith.constant 2 : i32
    %410 = vector.broadcast %c2_i32 : i32 to vector<8x1xi32>
    %411 = arith.cmpi sgt, %320, %410 : vector<8x1xi32>
    %412 = vector.shape_cast %411 : vector<8x1xi1> to vector<8x1xi1>
    %413 = vector.broadcast %412 : vector<8x1xi1> to vector<8x32xi1>
    %414 = arith.select %413, %409, %382 : vector<8x32xi1>, vector<8x32xf32>
    %cst_280 = arith.constant 0.000000e+00 : f32
    %415 = vector.shape_cast %411 : vector<8x1xi1> to vector<8x1xi1>
    %416 = vector.broadcast %415 : vector<8x1xi1> to vector<8x32xi1>
    %417 = vector.broadcast %cst_280 : f32 to vector<8x32xf32>
    %418 = arith.select %416, %409, %417 : vector<8x32xi1>, vector<8x32xf32>
    %c0_281 = arith.constant 0 : index
    %c64 = arith.constant 64 : index
    %419 = vector.load %arg5[%c0_281, %c64] : memref<8x256xf32, #tpu.memory_space<vmem>>, vector<8x32xf32>
    tpu.vector_store %arg5[%c0_281, %c64], %418 {strides = array<i32>} : memref<8x256xf32, #tpu.memory_space<vmem>>, vector<8x32xf32>,
    %c24_282 = arith.constant 24 : index
    %c0_283 = arith.constant 0 : index
    %420 = vector.load %arg7[%c24_282, %c0_283] : memref<64x96xf32, #tpu.memory_space<vmem>>, vector<8x96xf32>
    %cst_284 = arith.constant dense<0.000000e+00> : vector<8x96xf32>
    %421 = tpu.matmul %414, %321, %cst_284 {dimension_numbers = #tpu.dot_dimension_numbers<[1], [0], [0], [1], [0, 0, 1, 1], [], []>} : vector<8x32xf32>, vector<32x96xf32>, vector<8x96xf32> -> vector<8x96xf32>
    %422 = vector.extract_strided_slice %420 {offsets = [0, 0], sizes = [8, 64], strides = [1, 1]} : vector<8x96xf32> to vector<8x64xf32>
    %423 = vector.extract_strided_slice %421 {offsets = [0, 0], sizes = [8, 64], strides = [1, 1]} : vector<8x96xf32> to vector<8x64xf32>
    %424 = arith.addf %422, %423 : vector<8x64xf32>
    %425 = arith.negf %424 : vector<8x64xf32>
    %426 = math.exp %425 : vector<8x64xf32>
    %cst_285 = arith.constant 1.000000e+00 : f32
    %427 = vector.broadcast %cst_285 : f32 to vector<8x64xf32>
    %428 = arith.addf %427, %426 : vector<8x64xf32>
    %429 = arith.divf %427, %428 : vector<8x64xf32>
    %430 = vector.extract_strided_slice %429 {offsets = [0, 0], sizes = [8, 32], strides = [1, 1]} : vector<8x64xf32> to vector<8x32xf32>
    %431 = vector.extract_strided_slice %429 {offsets = [0, 32], sizes = [8, 32], strides = [1, 1]} : vector<8x64xf32> to vector<8x32xf32>
    %432 = vector.extract_strided_slice %420 {offsets = [0, 64], sizes = [8, 32], strides = [1, 1]} : vector<8x96xf32> to vector<8x32xf32>
    %433 = vector.extract_strided_slice %421 {offsets = [0, 64], sizes = [8, 32], strides = [1, 1]} : vector<8x96xf32> to vector<8x32xf32>
    %434 = vector.broadcast %322 : vector<1x32xf32> to vector<8x32xf32>
    %435 = arith.addf %433, %434 : vector<8x32xf32>
    %436 = arith.mulf %430, %435 : vector<8x32xf32>
    %437 = arith.addf %432, %436 : vector<8x32xf32>
    %438 = math.tanh %437 : vector<8x32xf32>
    %439 = arith.subf %414, %438 : vector<8x32xf32>
    %440 = arith.mulf %431, %439 : vector<8x32xf32>
    %441 = arith.addf %438, %440 : vector<8x32xf32>
    %c3_i32 = arith.constant 3 : i32
    %442 = vector.broadcast %c3_i32 : i32 to vector<8x1xi32>
    %443 = arith.cmpi sgt, %320, %442 : vector<8x1xi32>
    %444 = vector.shape_cast %443 : vector<8x1xi1> to vector<8x1xi1>
    %445 = vector.broadcast %444 : vector<8x1xi1> to vector<8x32xi1>
    %446 = arith.select %445, %441, %414 : vector<8x32xi1>, vector<8x32xf32>
    %cst_286 = arith.constant 0.000000e+00 : f32
    %447 = vector.shape_cast %443 : vector<8x1xi1> to vector<8x1xi1>
    %448 = vector.broadcast %447 : vector<8x1xi1> to vector<8x32xi1>
    %449 = vector.broadcast %cst_286 : f32 to vector<8x32xf32>
    %450 = arith.select %448, %441, %449 : vector<8x32xi1>, vector<8x32xf32>
    %c0_287 = arith.constant 0 : index
    %c96 = arith.constant 96 : index
    %451 = vector.load %arg5[%c0_287, %c96] : memref<8x256xf32, #tpu.memory_space<vmem>>, vector<8x32xf32>
    tpu.vector_store %arg5[%c0_287, %c96], %450 {strides = array<i32>} : memref<8x256xf32, #tpu.memory_space<vmem>>, vector<8x32xf32>,
    %c32_288 = arith.constant 32 : index
    %c0_289 = arith.constant 0 : index
    %452 = vector.load %arg7[%c32_288, %c0_289] : memref<64x96xf32, #tpu.memory_space<vmem>>, vector<8x96xf32>
    %cst_290 = arith.constant dense<0.000000e+00> : vector<8x96xf32>
    %453 = tpu.matmul %446, %321, %cst_290 {dimension_numbers = #tpu.dot_dimension_numbers<[1], [0], [0], [1], [0, 0, 1, 1], [], []>} : vector<8x32xf32>, vector<32x96xf32>, vector<8x96xf32> -> vector<8x96xf32>
    %454 = vector.extract_strided_slice %452 {offsets = [0, 0], sizes = [8, 64], strides = [1, 1]} : vector<8x96xf32> to vector<8x64xf32>
    %455 = vector.extract_strided_slice %453 {offsets = [0, 0], sizes = [8, 64], strides = [1, 1]} : vector<8x96xf32> to vector<8x64xf32>
    %456 = arith.addf %454, %455 : vector<8x64xf32>
    %457 = arith.negf %456 : vector<8x64xf32>
    %458 = math.exp %457 : vector<8x64xf32>
    %cst_291 = arith.constant 1.000000e+00 : f32
    %459 = vector.broadcast %cst_291 : f32 to vector<8x64xf32>
    %460 = arith.addf %459, %458 : vector<8x64xf32>
    %461 = arith.divf %459, %460 : vector<8x64xf32>
    %462 = vector.extract_strided_slice %461 {offsets = [0, 0], sizes = [8, 32], strides = [1, 1]} : vector<8x64xf32> to vector<8x32xf32>
    %463 = vector.extract_strided_slice %461 {offsets = [0, 32], sizes = [8, 32], strides = [1, 1]} : vector<8x64xf32> to vector<8x32xf32>
    %464 = vector.extract_strided_slice %452 {offsets = [0, 64], sizes = [8, 32], strides = [1, 1]} : vector<8x96xf32> to vector<8x32xf32>
    %465 = vector.extract_strided_slice %453 {offsets = [0, 64], sizes = [8, 32], strides = [1, 1]} : vector<8x96xf32> to vector<8x32xf32>
    %466 = vector.broadcast %322 : vector<1x32xf32> to vector<8x32xf32>
    %467 = arith.addf %465, %466 : vector<8x32xf32>
    %468 = arith.mulf %462, %467 : vector<8x32xf32>
    %469 = arith.addf %464, %468 : vector<8x32xf32>
    %470 = math.tanh %469 : vector<8x32xf32>
    %471 = arith.subf %446, %470 : vector<8x32xf32>
    %472 = arith.mulf %463, %471 : vector<8x32xf32>
    %473 = arith.addf %470, %472 : vector<8x32xf32>
    %c4_i32 = arith.constant 4 : i32
    %474 = vector.broadcast %c4_i32 : i32 to vector<8x1xi32>
    %475 = arith.cmpi sgt, %320, %474 : vector<8x1xi32>
    %476 = vector.shape_cast %475 : vector<8x1xi1> to vector<8x1xi1>
    %477 = vector.broadcast %476 : vector<8x1xi1> to vector<8x32xi1>
    %478 = arith.select %477, %473, %446 : vector<8x32xi1>, vector<8x32xf32>
    %cst_292 = arith.constant 0.000000e+00 : f32
    %479 = vector.shape_cast %475 : vector<8x1xi1> to vector<8x1xi1>
    %480 = vector.broadcast %479 : vector<8x1xi1> to vector<8x32xi1>
    %481 = vector.broadcast %cst_292 : f32 to vector<8x32xf32>
    %482 = arith.select %480, %473, %481 : vector<8x32xi1>, vector<8x32xf32>
    %c0_293 = arith.constant 0 : index
    %c128 = arith.constant 128 : index
    %483 = vector.load %arg5[%c0_293, %c128] : memref<8x256xf32, #tpu.memory_space<vmem>>, vector<8x32xf32>
    tpu.vector_store %arg5[%c0_293, %c128], %482 {strides = array<i32>} : memref<8x256xf32, #tpu.memory_space<vmem>>, vector<8x32xf32>,
    %c40_294 = arith.constant 40 : index
    %c0_295 = arith.constant 0 : index
    %484 = vector.load %arg7[%c40_294, %c0_295] : memref<64x96xf32, #tpu.memory_space<vmem>>, vector<8x96xf32>
    %cst_296 = arith.constant dense<0.000000e+00> : vector<8x96xf32>
    %485 = tpu.matmul %478, %321, %cst_296 {dimension_numbers = #tpu.dot_dimension_numbers<[1], [0], [0], [1], [0, 0, 1, 1], [], []>} : vector<8x32xf32>, vector<32x96xf32>, vector<8x96xf32> -> vector<8x96xf32>
    %486 = vector.extract_strided_slice %484 {offsets = [0, 0], sizes = [8, 64], strides = [1, 1]} : vector<8x96xf32> to vector<8x64xf32>
    %487 = vector.extract_strided_slice %485 {offsets = [0, 0], sizes = [8, 64], strides = [1, 1]} : vector<8x96xf32> to vector<8x64xf32>
    %488 = arith.addf %486, %487 : vector<8x64xf32>
    %489 = arith.negf %488 : vector<8x64xf32>
    %490 = math.exp %489 : vector<8x64xf32>
    %cst_297 = arith.constant 1.000000e+00 : f32
    %491 = vector.broadcast %cst_297 : f32 to vector<8x64xf32>
    %492 = arith.addf %491, %490 : vector<8x64xf32>
    %493 = arith.divf %491, %492 : vector<8x64xf32>
    %494 = vector.extract_strided_slice %493 {offsets = [0, 0], sizes = [8, 32], strides = [1, 1]} : vector<8x64xf32> to vector<8x32xf32>
    %495 = vector.extract_strided_slice %493 {offsets = [0, 32], sizes = [8, 32], strides = [1, 1]} : vector<8x64xf32> to vector<8x32xf32>
    %496 = vector.extract_strided_slice %484 {offsets = [0, 64], sizes = [8, 32], strides = [1, 1]} : vector<8x96xf32> to vector<8x32xf32>
    %497 = vector.extract_strided_slice %485 {offsets = [0, 64], sizes = [8, 32], strides = [1, 1]} : vector<8x96xf32> to vector<8x32xf32>
    %498 = vector.broadcast %322 : vector<1x32xf32> to vector<8x32xf32>
    %499 = arith.addf %497, %498 : vector<8x32xf32>
    %500 = arith.mulf %494, %499 : vector<8x32xf32>
    %501 = arith.addf %496, %500 : vector<8x32xf32>
    %502 = math.tanh %501 : vector<8x32xf32>
    %503 = arith.subf %478, %502 : vector<8x32xf32>
    %504 = arith.mulf %495, %503 : vector<8x32xf32>
    %505 = arith.addf %502, %504 : vector<8x32xf32>
    %c5_i32 = arith.constant 5 : i32
    %506 = vector.broadcast %c5_i32 : i32 to vector<8x1xi32>
    %507 = arith.cmpi sgt, %320, %506 : vector<8x1xi32>
    %508 = vector.shape_cast %507 : vector<8x1xi1> to vector<8x1xi1>
    %509 = vector.broadcast %508 : vector<8x1xi1> to vector<8x32xi1>
    %510 = arith.select %509, %505, %478 : vector<8x32xi1>, vector<8x32xf32>
    %cst_298 = arith.constant 0.000000e+00 : f32
    %511 = vector.shape_cast %507 : vector<8x1xi1> to vector<8x1xi1>
    %512 = vector.broadcast %511 : vector<8x1xi1> to vector<8x32xi1>
    %513 = vector.broadcast %cst_298 : f32 to vector<8x32xf32>
    %514 = arith.select %512, %505, %513 : vector<8x32xi1>, vector<8x32xf32>
    %c0_299 = arith.constant 0 : index
    %c160 = arith.constant 160 : index
    %515 = vector.load %arg5[%c0_299, %c160] : memref<8x256xf32, #tpu.memory_space<vmem>>, vector<8x32xf32>
    tpu.vector_store %arg5[%c0_299, %c160], %514 {strides = array<i32>} : memref<8x256xf32, #tpu.memory_space<vmem>>, vector<8x32xf32>,
    %c48_300 = arith.constant 48 : index
    %c0_301 = arith.constant 0 : index
    %516 = vector.load %arg7[%c48_300, %c0_301] : memref<64x96xf32, #tpu.memory_space<vmem>>, vector<8x96xf32>
    %cst_302 = arith.constant dense<0.000000e+00> : vector<8x96xf32>
    %517 = tpu.matmul %510, %321, %cst_302 {dimension_numbers = #tpu.dot_dimension_numbers<[1], [0], [0], [1], [0, 0, 1, 1], [], []>} : vector<8x32xf32>, vector<32x96xf32>, vector<8x96xf32> -> vector<8x96xf32>
    %518 = vector.extract_strided_slice %516 {offsets = [0, 0], sizes = [8, 64], strides = [1, 1]} : vector<8x96xf32> to vector<8x64xf32>
    %519 = vector.extract_strided_slice %517 {offsets = [0, 0], sizes = [8, 64], strides = [1, 1]} : vector<8x96xf32> to vector<8x64xf32>
    %520 = arith.addf %518, %519 : vector<8x64xf32>
    %521 = arith.negf %520 : vector<8x64xf32>
    %522 = math.exp %521 : vector<8x64xf32>
    %cst_303 = arith.constant 1.000000e+00 : f32
    %523 = vector.broadcast %cst_303 : f32 to vector<8x64xf32>
    %524 = arith.addf %523, %522 : vector<8x64xf32>
    %525 = arith.divf %523, %524 : vector<8x64xf32>
    %526 = vector.extract_strided_slice %525 {offsets = [0, 0], sizes = [8, 32], strides = [1, 1]} : vector<8x64xf32> to vector<8x32xf32>
    %527 = vector.extract_strided_slice %525 {offsets = [0, 32], sizes = [8, 32], strides = [1, 1]} : vector<8x64xf32> to vector<8x32xf32>
    %528 = vector.extract_strided_slice %516 {offsets = [0, 64], sizes = [8, 32], strides = [1, 1]} : vector<8x96xf32> to vector<8x32xf32>
    %529 = vector.extract_strided_slice %517 {offsets = [0, 64], sizes = [8, 32], strides = [1, 1]} : vector<8x96xf32> to vector<8x32xf32>
    %530 = vector.broadcast %322 : vector<1x32xf32> to vector<8x32xf32>
    %531 = arith.addf %529, %530 : vector<8x32xf32>
    %532 = arith.mulf %526, %531 : vector<8x32xf32>
    %533 = arith.addf %528, %532 : vector<8x32xf32>
    %534 = math.tanh %533 : vector<8x32xf32>
    %535 = arith.subf %510, %534 : vector<8x32xf32>
    %536 = arith.mulf %527, %535 : vector<8x32xf32>
    %537 = arith.addf %534, %536 : vector<8x32xf32>
    %c6_i32 = arith.constant 6 : i32
    %538 = vector.broadcast %c6_i32 : i32 to vector<8x1xi32>
    %539 = arith.cmpi sgt, %320, %538 : vector<8x1xi32>
    %540 = vector.shape_cast %539 : vector<8x1xi1> to vector<8x1xi1>
    %541 = vector.broadcast %540 : vector<8x1xi1> to vector<8x32xi1>
    %542 = arith.select %541, %537, %510 : vector<8x32xi1>, vector<8x32xf32>
    %cst_304 = arith.constant 0.000000e+00 : f32
    %543 = vector.shape_cast %539 : vector<8x1xi1> to vector<8x1xi1>
    %544 = vector.broadcast %543 : vector<8x1xi1> to vector<8x32xi1>
    %545 = vector.broadcast %cst_304 : f32 to vector<8x32xf32>
    %546 = arith.select %544, %537, %545 : vector<8x32xi1>, vector<8x32xf32>
    %c0_305 = arith.constant 0 : index
    %c192 = arith.constant 192 : index
    %547 = vector.load %arg5[%c0_305, %c192] : memref<8x256xf32, #tpu.memory_space<vmem>>, vector<8x32xf32>
    tpu.vector_store %arg5[%c0_305, %c192], %546 {strides = array<i32>} : memref<8x256xf32, #tpu.memory_space<vmem>>, vector<8x32xf32>,
    %c56_306 = arith.constant 56 : index
    %c0_307 = arith.constant 0 : index
    %548 = vector.load %arg7[%c56_306, %c0_307] : memref<64x96xf32, #tpu.memory_space<vmem>>, vector<8x96xf32>
    %cst_308 = arith.constant dense<0.000000e+00> : vector<8x96xf32>
    %549 = tpu.matmul %542, %321, %cst_308 {dimension_numbers = #tpu.dot_dimension_numbers<[1], [0], [0], [1], [0, 0, 1, 1], [], []>} : vector<8x32xf32>, vector<32x96xf32>, vector<8x96xf32> -> vector<8x96xf32>
    %550 = vector.extract_strided_slice %548 {offsets = [0, 0], sizes = [8, 64], strides = [1, 1]} : vector<8x96xf32> to vector<8x64xf32>
    %551 = vector.extract_strided_slice %549 {offsets = [0, 0], sizes = [8, 64], strides = [1, 1]} : vector<8x96xf32> to vector<8x64xf32>
    %552 = arith.addf %550, %551 : vector<8x64xf32>
    %553 = arith.negf %552 : vector<8x64xf32>
    %554 = math.exp %553 : vector<8x64xf32>
    %cst_309 = arith.constant 1.000000e+00 : f32
    %555 = vector.broadcast %cst_309 : f32 to vector<8x64xf32>
    %556 = arith.addf %555, %554 : vector<8x64xf32>
    %557 = arith.divf %555, %556 : vector<8x64xf32>
    %558 = vector.extract_strided_slice %557 {offsets = [0, 0], sizes = [8, 32], strides = [1, 1]} : vector<8x64xf32> to vector<8x32xf32>
    %559 = vector.extract_strided_slice %557 {offsets = [0, 32], sizes = [8, 32], strides = [1, 1]} : vector<8x64xf32> to vector<8x32xf32>
    %560 = vector.extract_strided_slice %548 {offsets = [0, 64], sizes = [8, 32], strides = [1, 1]} : vector<8x96xf32> to vector<8x32xf32>
    %561 = vector.extract_strided_slice %549 {offsets = [0, 64], sizes = [8, 32], strides = [1, 1]} : vector<8x96xf32> to vector<8x32xf32>
    %562 = vector.broadcast %322 : vector<1x32xf32> to vector<8x32xf32>
    %563 = arith.addf %561, %562 : vector<8x32xf32>
    %564 = arith.mulf %558, %563 : vector<8x32xf32>
    %565 = arith.addf %560, %564 : vector<8x32xf32>
    %566 = math.tanh %565 : vector<8x32xf32>
    %567 = arith.subf %542, %566 : vector<8x32xf32>
    %568 = arith.mulf %559, %567 : vector<8x32xf32>
    %569 = arith.addf %566, %568 : vector<8x32xf32>
    %c7_i32 = arith.constant 7 : i32
    %570 = vector.broadcast %c7_i32 : i32 to vector<8x1xi32>
    %571 = arith.cmpi sgt, %320, %570 : vector<8x1xi32>
    %572 = vector.shape_cast %571 : vector<8x1xi1> to vector<8x1xi1>
    %573 = vector.broadcast %572 : vector<8x1xi1> to vector<8x32xi1>
    %574 = arith.select %573, %569, %542 : vector<8x32xi1>, vector<8x32xf32>
    %cst_310 = arith.constant 0.000000e+00 : f32
    %575 = vector.shape_cast %571 : vector<8x1xi1> to vector<8x1xi1>
    %576 = vector.broadcast %575 : vector<8x1xi1> to vector<8x32xi1>
    %577 = vector.broadcast %cst_310 : f32 to vector<8x32xf32>
    %578 = arith.select %576, %569, %577 : vector<8x32xi1>, vector<8x32xf32>
    %c0_311 = arith.constant 0 : index
    %c224 = arith.constant 224 : index
    %579 = vector.load %arg5[%c0_311, %c224] : memref<8x256xf32, #tpu.memory_space<vmem>>, vector<8x32xf32>
    tpu.vector_store %arg5[%c0_311, %c224], %578 {strides = array<i32>} : memref<8x256xf32, #tpu.memory_space<vmem>>, vector<8x32xf32>,
    %c0_312 = arith.constant 0 : index
    %c0_313 = arith.constant 0 : index
    %580 = vector.load %arg6[%c0_312, %c0_313] : memref<8x32xf32, #tpu.memory_space<vmem>>, vector<8x32xf32>
    tpu.vector_store %arg6[%c0_312, %c0_313], %574 {strides = array<i32>} : memref<8x32xf32, #tpu.memory_space<vmem>>, vector<8x32xf32>,
    return
  }
}

</mosaic_0001>

<llo_original>
// kernel: tpu_custom_call.1
$region0: #{tpu_custom_call.1}
  #allocation0 [shape = 'u32[]', space=smem, size = 0x4, offset = 0x4, fixed_abs, tag = 'smem constant byte address 0x4 - core index']
  #allocation1 [shape = 'u32[144,128]{1,0:T(1,128)}', space=vmem, size = 0x12000, scoped, tag = 'internal scratch']
  #allocation2 [shape = 'f32[64,96]{1,0:T(8,128)}', space=vmem, size = 0x8000, scoped, tag = 'scratch operand']
  %s0 = inlined_call_operand.vmem [shape: s32[64], index: 0, kind: input, shape index: {}]
  %s1 = inlined_call_operand.vmem [shape: s32[8,1], index: 1, kind: input, shape index: {}]
  %s2 = inlined_call_operand.hbm [shape: f32[50,1,96], index: 2, kind: input, shape index: {}]
  %s3 = inlined_call_operand.hbm [shape: f32[32,96], index: 3, kind: input, shape index: {}]
  %s4 = inlined_call_operand.vmem [shape: f32[1,32], index: 4, kind: input, shape index: {}]
  %s5 = inlined_call_operand.hbm [shape: f32[8,256], index: 5, kind: output, shape index: {0}]
  %s6 = inlined_call_operand.hbm [shape: f32[8,32], index: 6, kind: output, shape index: {1}]
  %7 = xla_tuple %s5, %s6
  %s8 = sld [smem:[#allocation0]]
  $region50: #{tpu_custom_call.1} parent=0
    _
  %s10 = ssub.s32 1, %s8
  %s11 = scalar_select 0, %s10, %s8
  $region1: #{tpu_custom_call.1} parent=0
    #allocation3 [shape = 'u8[512]{0}', space=smem, size = 0x200, scoped, tag = 'input window, operand 0, single buffered']
    #allocation4 [shape = 's32[1]{0}', space=sflag, size = 0x4, scoped, tag = 'scoped memory for tpu_custom_call.1']
    #allocation5 [shape = 's32[1]{0}', space=sflag, size = 0x4, scoped, tag = 'scoped memory for tpu_custom_call.1']
    #allocation6 [shape = 's32[1]{0}', space=sflag, size = 0x4, scoped, tag = 'scoped memory for tpu_custom_call.1']
    #allocation7 [shape = 'u8[25600]{0}', space=vmem, size = 0x6400, scoped, tag = 'input window, operand 2, single buffered']
    #allocation8 [shape = 'u8[16384]{0}', space=vmem, size = 0x4000, scoped, tag = 'input window, operand 3, single buffered']
    #allocation9 [shape = 's32[1]{0}', space=sflag, size = 0x4, scoped, tag = 'scoped memory for tpu_custom_call.1']
    #allocation10 [shape = 'u8[8192]{0}', space=vmem, size = 0x2000, scoped, tag = 'output window, operand 0, single buffered']
    #allocation11 [shape = 'u8[4096]{0}', space=vmem, size = 0x1000, scoped, tag = 'output window, operand 1, single buffered']
    #allocation12 [shape = 's32[1]{0}', space=sflag, size = 0x4, scoped, tag = 'scoped memory for tpu_custom_call.1']
    %12 = vsyncpa [#allocation6], 0
    %13 = vsyncpa [#allocation4], 0
    %14 = vsyncpa [#allocation9], 0
    %15 = vsyncpa [#allocation5], 0
    %16 = vsyncpa [#allocation12], 0
    // Predicated region
    $region2: #{tpu_custom_call.1} parent=1 // pred_check
      _
    $region3: #{tpu_custom_call.1} parent=1 // pred_check_branch
      %18 = sbr.rel (0) target = $region5
    $region4: #{tpu_custom_call.1} parent=1 // pred_region
      %s20 = ssub.s32 16, 16
      %21 = vsyncadd [#allocation6], %s20
      %s23 = sshll.u32 %s0, 4
      %s24 = int_to_ptr.vmem [resolvable:$true] %s23
      %26 = dma.vmem_to_smem %s24, 16, [#allocation3], [#allocation6]
    $region5: #{tpu_custom_call.1} parent=1 // pred_fallthru
      _
    // Predicated region
    $region6: #{tpu_custom_call.1} parent=1 // pred_check
      _
    $region7: #{tpu_custom_call.1} parent=1 // pred_check_branch
      %28 = sbr.rel (0) target = $region9
    $region8: #{tpu_custom_call.1} parent=1 // pred_region
      _
    $region9: #{tpu_custom_call.1} parent=1 // pred_fallthru
      _
    // Predicated region
    $region10: #{tpu_custom_call.1} parent=1 // pred_check
      _
    $region11: #{tpu_custom_call.1} parent=1 // pred_check_branch
      %30 = sbr.rel (0) target = $region13
    $region12: #{tpu_custom_call.1} parent=1 // pred_region
      %s32 = ssub.s32 800, 800
      %33 = vsyncadd [#allocation4], %s32
      %s34 = sshll.u32 [#allocation7], 4
      %s35 = int_to_ptr.vmem [resolvable:$true] %s34
      %40 = dma.hbm_to_vmem [thread:$0]  %s2, 800, %s35, [#allocation4], 16, 16, 1
    $region13: #{tpu_custom_call.1} parent=1 // pred_fallthru
      _
    // Predicated region
    $region14: #{tpu_custom_call.1} parent=1 // pred_check
      _
    $region15: #{tpu_custom_call.1} parent=1 // pred_check_branch
      %42 = sbr.rel (0) target = $region17
    $region16: #{tpu_custom_call.1} parent=1 // pred_region
      %s44 = ssub.s32 512, 512
      %45 = vsyncadd [#allocation9], %s44
      %s46 = sshll.u32 [#allocation8], 4
      %s47 = int_to_ptr.vmem [resolvable:$true] %s46
      %52 = dma.hbm_to_vmem [thread:$0]  %s3, 512, %s47, [#allocation9], 128, 128, 8
    $region17: #{tpu_custom_call.1} parent=1 // pred_fallthru
      _
    // Predicated region
    $region18: #{tpu_custom_call.1} parent=1 // pred_check
      _
    $region19: #{tpu_custom_call.1} parent=1 // pred_check_branch
      %54 = sbr.rel (0) target = $region21
    $region20: #{tpu_custom_call.1} parent=1 // pred_region
      _
    $region21: #{tpu_custom_call.1} parent=1 // pred_fallthru
      _
    // Predicated region
    $region22: #{tpu_custom_call.1} parent=1 // pred_check
      _
    $region23: #{tpu_custom_call.1} parent=1 // pred_check_branch
      %56 = sbr.rel (0) target = $region25
    $region24: #{tpu_custom_call.1} parent=1 // pred_region
      %57 = dma.done [#allocation6], 16
    $region25: #{tpu_custom_call.1} parent=1 // pred_fallthru
      _
    // Predicated region
    $region26: #{tpu_custom_call.1} parent=1 // pred_check
      _
    $region27: #{tpu_custom_call.1} parent=1 // pred_check_branch
      %59 = sbr.rel (0) target = $region29
    $region28: #{tpu_custom_call.1} parent=1 // pred_region
      %60 = dma.done [#allocation4], 800
    $region29: #{tpu_custom_call.1} parent=1 // pred_fallthru
      _
    // Predicated region
    $region30: #{tpu_custom_call.1} parent=1 // pred_check
      _
    $region31: #{tpu_custom_call.1} parent=1 // pred_check_branch
      %62 = sbr.rel (0) target = $region33
    $region32: #{tpu_custom_call.1} parent=1 // pred_region
      %63 = dma.done [#allocation9], 512
    $region33: #{tpu_custom_call.1} parent=1 // pred_fallthru
      _
    %64 = sfence
    %s65 = sld [smem:[#allocation3]]
    %s66 = scalar_lea.vmem [#allocation7], %s65
    %v67 = vld [vmem:[%s66] sm:$0x1]
    %vm68 = vcmask 778240
    %69 = vst.msk [vmem:[#allocation2] sm:$0x1] %vm68, %v67
    %s70 = sld [smem:[#allocation3 + $0x1]]
    %s71 = scalar_lea.vmem [#allocation7], %s70
    %v72 = vld [vmem:[%s71] sm:$0x1]
    %73 = vst.msk [vmem:[#allocation2 + $0x1] sm:$0x1] %vm68, %v72
    %s74 = sld [smem:[#allocation3 + $0x2]]
    %s75 = scalar_lea.vmem [#allocation7], %s74
    %v76 = vld [vmem:[%s75] sm:$0x1]
    %77 = vst.msk [vmem:[#allocation2 + $0x2] sm:$0x1] %vm68, %v76
    %s78 = sld [smem:[#allocation3 + $0x3]]
    %s79 = scalar_lea.vmem [#allocation7], %s78
    %v80 = vld [vmem:[%s79] sm:$0x1]
    %81 = vst.msk [vmem:[#allocation2 + $0x3] sm:$0x1] %vm68, %v80
    %s82 = sld [smem:[#allocation3 + $0x4]]
    %s83 = scalar_lea.vmem [#allocation7], %s82
    %v84 = vld [vmem:[%s83] sm:$0x1]
    %85 = vst.msk [vmem:[#allocation2 + $0x4] sm:$0x1] %vm68, %v84
    %s86 = sld [smem:[#allocation3 + $0x5]]
    %s87 = scalar_lea.vmem [#allocation7], %s86
    %v88 = vld [vmem:[%s87] sm:$0x1]
    %89 = vst.msk [vmem:[#allocation2 + $0x5] sm:$0x1] %vm68, %v88
    %s90 = sld [smem:[#allocation3 + $0x6]]
    %s91 = scalar_lea.vmem [#allocation7], %s90
    %v92 = vld [vmem:[%s91] sm:$0x1]
    %93 = vst.msk [vmem:[#allocation2 + $0x6] sm:$0x1] %vm68, %v92
    %s94 = sld [smem:[#allocation3 + $0x7]]
    %s95 = scalar_lea.vmem [#allocation7], %s94
    %v96 = vld [vmem:[%s95] sm:$0x1]
    %97 = vst.msk [vmem:[#allocation2 + $0x7] sm:$0x1] %vm68, %v96
    %s98 = sld [smem:[#allocation3 + $0x8]]
    %s99 = scalar_lea.vmem [#allocation7], %s98
    %v100 = vld [vmem:[%s99] sm:$0x1]
    %101 = vst.msk [vmem:[#allocation2 + $0x8] sm:$0x1] %vm68, %v100
    %s102 = sld [smem:[#allocation3 + $0x9]]
    %s103 = scalar_lea.vmem [#allocation7], %s102
    %v104 = vld [vmem:[%s103] sm:$0x1]
    %105 = vst.msk [vmem:[#allocation2 + $0x9] sm:$0x1] %vm68, %v104
    %s106 = sld [smem:[#allocation3 + $0xa]]
    %s107 = scalar_lea.vmem [#allocation7], %s106
    %v108 = vld [vmem:[%s107] sm:$0x1]
    %109 = vst.msk [vmem:[#allocation2 + $0xa] sm:$0x1] %vm68, %v108
    %s110 = sld [smem:[#allocation3 + $0xb]]
    %s111 = scalar_lea.vmem [#allocation7], %s110
    %v112 = vld [vmem:[%s111] sm:$0x1]
    %113 = vst.msk [vmem:[#allocation2 + $0xb] sm:$0x1] %vm68, %v112
    %s114 = sld [smem:[#allocation3 + $0xc]]
    %s115 = scalar_lea.vmem [#allocation7], %s114
    %v116 = vld [vmem:[%s115] sm:$0x1]
    %117 = vst.msk [vmem:[#allocation2 + $0xc] sm:$0x1] %vm68, %v116
    %s118 = sld [smem:[#allocation3 + $0xd]]
    %s119 = scalar_lea.vmem [#allocation7], %s118
    %v120 = vld [vmem:[%s119] sm:$0x1]
    %121 = vst.msk [vmem:[#allocation2 + $0xd] sm:$0x1] %vm68, %v120
    %s122 = sld [smem:[#allocation3 + $0xe]]
    %s123 = scalar_lea.vmem [#allocation7], %s122
    %v124 = vld [vmem:[%s123] sm:$0x1]
    %125 = vst.msk [vmem:[#allocation2 + $0xe] sm:$0x1] %vm68, %v124
    %s126 = sld [smem:[#allocation3 + $0xf]]
    %s127 = scalar_lea.vmem [#allocation7], %s126
    %v128 = vld [vmem:[%s127] sm:$0x1]
    %129 = vst.msk [vmem:[#allocation2 + $0xf] sm:$0x1] %vm68, %v128
    %s130 = sld [smem:[#allocation3 + $0x10]]
    %s131 = scalar_lea.vmem [#allocation7], %s130
    %v132 = vld [vmem:[%s131] sm:$0x1]
    %133 = vst.msk [vmem:[#allocation2 + $0x10] sm:$0x1] %vm68, %v132
    %s134 = sld [smem:[#allocation3 + $0x11]]
    %s135 = scalar_lea.vmem [#allocation7], %s134
    %v136 = vld [vmem:[%s135] sm:$0x1]
    %137 = vst.msk [vmem:[#allocation2 + $0x11] sm:$0x1] %vm68, %v136
    %s138 = sld [smem:[#allocation3 + $0x12]]
    %s139 = scalar_lea.vmem [#allocation7], %s138
    %v140 = vld [vmem:[%s139] sm:$0x1]
    %141 = vst.msk [vmem:[#allocation2 + $0x12] sm:$0x1] %vm68, %v140
    %s142 = sld [smem:[#allocation3 + $0x13]]
    %s143 = scalar_lea.vmem [#allocation7], %s142
    %v144 = vld [vmem:[%s143] sm:$0x1]
    %145 = vst.msk [vmem:[#allocation2 + $0x13] sm:$0x1] %vm68, %v144
    %s146 = sld [smem:[#allocation3 + $0x14]]
    %s147 = scalar_lea.vmem [#allocation7], %s146
    %v148 = vld [vmem:[%s147] sm:$0x1]
    %149 = vst.msk [vmem:[#allocation2 + $0x14] sm:$0x1] %vm68, %v148
    %s150 = sld [smem:[#allocation3 + $0x15]]
    %s151 = scalar_lea.vmem [#allocation7], %s150
    %v152 = vld [vmem:[%s151] sm:$0x1]
    %153 = vst.msk [vmem:[#allocation2 + $0x15] sm:$0x1] %vm68, %v152
    %s154 = sld [smem:[#allocation3 + $0x16]]
    %s155 = scalar_lea.vmem [#allocation7], %s154
    %v156 = vld [vmem:[%s155] sm:$0x1]
    %157 = vst.msk [vmem:[#allocation2 + $0x16] sm:$0x1] %vm68, %v156
    %s158 = sld [smem:[#allocation3 + $0x17]]
    %s159 = scalar_lea.vmem [#allocation7], %s158
    %v160 = vld [vmem:[%s159] sm:$0x1]
    %161 = vst.msk [vmem:[#allocation2 + $0x17] sm:$0x1] %vm68, %v160
    %s162 = sld [smem:[#allocation3 + $0x18]]
    %s163 = scalar_lea.vmem [#allocation7], %s162
    %v164 = vld [vmem:[%s163] sm:$0x1]
    %165 = vst.msk [vmem:[#allocation2 + $0x18] sm:$0x1] %vm68, %v164
    %s166 = sld [smem:[#allocation3 + $0x19]]
    %s167 = scalar_lea.vmem [#allocation7], %s166
    %v168 = vld [vmem:[%s167] sm:$0x1]
    %169 = vst.msk [vmem:[#allocation2 + $0x19] sm:$0x1] %vm68, %v168
    %s170 = sld [smem:[#allocation3 + $0x1a]]
    %s171 = scalar_lea.vmem [#allocation7], %s170
    %v172 = vld [vmem:[%s171] sm:$0x1]
    %173 = vst.msk [vmem:[#allocation2 + $0x1a] sm:$0x1] %vm68, %v172
    %s174 = sld [smem:[#allocation3 + $0x1b]]
    %s175 = scalar_lea.vmem [#allocation7], %s174
    %v176 = vld [vmem:[%s175] sm:$0x1]
    %177 = vst.msk [vmem:[#allocation2 + $0x1b] sm:$0x1] %vm68, %v176
    %s178 = sld [smem:[#allocation3 + $0x1c]]
    %s179 = scalar_lea.vmem [#allocation7], %s178
    %v180 = vld [vmem:[%s179] sm:$0x1]
    %181 = vst.msk [vmem:[#allocation2 + $0x1c] sm:$0x1] %vm68, %v180
    %s182 = sld [smem:[#allocation3 + $0x1d]]
    %s183 = scalar_lea.vmem [#allocation7], %s182
    %v184 = vld [vmem:[%s183] sm:$0x1]
    %185 = vst.msk [vmem:[#allocation2 + $0x1d] sm:$0x1] %vm68, %v184
    %s186 = sld [smem:[#allocation3 + $0x1e]]
    %s187 = scalar_lea.vmem [#allocation7], %s186
    %v188 = vld [vmem:[%s187] sm:$0x1]
    %189 = vst.msk [vmem:[#allocation2 + $0x1e] sm:$0x1] %vm68, %v188
    %s190 = sld [smem:[#allocation3 + $0x1f]]
    %s191 = scalar_lea.vmem [#allocation7], %s190
    %v192 = vld [vmem:[%s191] sm:$0x1]
    %193 = vst.msk [vmem:[#allocation2 + $0x1f] sm:$0x1] %vm68, %v192
    %s194 = sld [smem:[#allocation3 + $0x20]]
    %s195 = scalar_lea.vmem [#allocation7], %s194
    %v196 = vld [vmem:[%s195] sm:$0x1]
    %197 = vst.msk [vmem:[#allocation2 + $0x20] sm:$0x1] %vm68, %v196
    %s198 = sld [smem:[#allocation3 + $0x21]]
    %s199 = scalar_lea.vmem [#allocation7], %s198
    %v200 = vld [vmem:[%s199] sm:$0x1]
    %201 = vst.msk [vmem:[#allocation2 + $0x21] sm:$0x1] %vm68, %v200
    %s202 = sld [smem:[#allocation3 + $0x22]]
    %s203 = scalar_lea.vmem [#allocation7], %s202
    %v204 = vld [vmem:[%s203] sm:$0x1]
    %205 = vst.msk [vmem:[#allocation2 + $0x22] sm:$0x1] %vm68, %v204
    %s206 = sld [smem:[#allocation3 + $0x23]]
    %s207 = scalar_lea.vmem [#allocation7], %s206
    %v208 = vld [vmem:[%s207] sm:$0x1]
    %209 = vst.msk [vmem:[#allocation2 + $0x23] sm:$0x1] %vm68, %v208
    %s210 = sld [smem:[#allocation3 + $0x24]]
    %s211 = scalar_lea.vmem [#allocation7], %s210
    %v212 = vld [vmem:[%s211] sm:$0x1]
    %213 = vst.msk [vmem:[#allocation2 + $0x24] sm:$0x1] %vm68, %v212
    %s214 = sld [smem:[#allocation3 + $0x25]]
    %s215 = scalar_lea.vmem [#allocation7], %s214
    %v216 = vld [vmem:[%s215] sm:$0x1]
    %217 = vst.msk [vmem:[#allocation2 + $0x25] sm:$0x1] %vm68, %v216
    %s218 = sld [smem:[#allocation3 + $0x26]]
    %s219 = scalar_lea.vmem [#allocation7], %s218
    %v220 = vld [vmem:[%s219] sm:$0x1]
    %221 = vst.msk [vmem:[#allocation2 + $0x26] sm:$0x1] %vm68, %v220
    %s222 = sld [smem:[#allocation3 + $0x27]]
    %s223 = scalar_lea.vmem [#allocation7], %s222
    %v224 = vld [vmem:[%s223] sm:$0x1]
    %225 = vst.msk [vmem:[#allocation2 + $0x27] sm:$0x1] %vm68, %v224
    %s226 = sld [smem:[#allocation3 + $0x28]]
    %s227 = scalar_lea.vmem [#allocation7], %s226
    %v228 = vld [vmem:[%s227] sm:$0x1]
    %229 = vst.msk [vmem:[#allocation2 + $0x28] sm:$0x1] %vm68, %v228
    %s230 = sld [smem:[#allocation3 + $0x29]]
    %s231 = scalar_lea.vmem [#allocation7], %s230
    %v232 = vld [vmem:[%s231] sm:$0x1]
    %233 = vst.msk [vmem:[#allocation2 + $0x29] sm:$0x1] %vm68, %v232
    %s234 = sld [smem:[#allocation3 + $0x2a]]
    %s235 = scalar_lea.vmem [#allocation7], %s234
    %v236 = vld [vmem:[%s235] sm:$0x1]
    %237 = vst.msk [vmem:[#allocation2 + $0x2a] sm:$0x1] %vm68, %v236
    %s238 = sld [smem:[#allocation3 + $0x2b]]
    %s239 = scalar_lea.vmem [#allocation7], %s238
    %v240 = vld [vmem:[%s239] sm:$0x1]
    %241 = vst.msk [vmem:[#allocation2 + $0x2b] sm:$0x1] %vm68, %v240
    %s242 = sld [smem:[#allocation3 + $0x2c]]
    %s243 = scalar_lea.vmem [#allocation7], %s242
    %v244 = vld [vmem:[%s243] sm:$0x1]
    %245 = vst.msk [vmem:[#allocation2 + $0x2c] sm:$0x1] %vm68, %v244
    %s246 = sld [smem:[#allocation3 + $0x2d]]
    %s247 = scalar_lea.vmem [#allocation7], %s246
    %v248 = vld [vmem:[%s247] sm:$0x1]
    %249 = vst.msk [vmem:[#allocation2 + $0x2d] sm:$0x1] %vm68, %v248
    %s250 = sld [smem:[#allocation3 + $0x2e]]
    %s251 = scalar_lea.vmem [#allocation7], %s250
    %v252 = vld [vmem:[%s251] sm:$0x1]
    %253 = vst.msk [vmem:[#allocation2 + $0x2e] sm:$0x1] %vm68, %v252
    %s254 = sld [smem:[#allocation3 + $0x2f]]
    %s255 = scalar_lea.vmem [#allocation7], %s254
    %v256 = vld [vmem:[%s255] sm:$0x1]
    %257 = vst.msk [vmem:[#allocation2 + $0x2f] sm:$0x1] %vm68, %v256
    %s258 = sld [smem:[#allocation3 + $0x30]]
    %s259 = scalar_lea.vmem [#allocation7], %s258
    %v260 = vld [vmem:[%s259] sm:$0x1]
    %261 = vst.msk [vmem:[#allocation2 + $0x30] sm:$0x1] %vm68, %v260
    %s262 = sld [smem:[#allocation3 + $0x31]]
    %s263 = scalar_lea.vmem [#allocation7], %s262
    %v264 = vld [vmem:[%s263] sm:$0x1]
    %265 = vst.msk [vmem:[#allocation2 + $0x31] sm:$0x1] %vm68, %v264
    %s266 = sld [smem:[#allocation3 + $0x32]]
    %s267 = scalar_lea.vmem [#allocation7], %s266
    %v268 = vld [vmem:[%s267] sm:$0x1]
    %269 = vst.msk [vmem:[#allocation2 + $0x32] sm:$0x1] %vm68, %v268
    %s270 = sld [smem:[#allocation3 + $0x33]]
    %s271 = scalar_lea.vmem [#allocation7], %s270
    %v272 = vld [vmem:[%s271] sm:$0x1]
    %273 = vst.msk [vmem:[#allocation2 + $0x33] sm:$0x1] %vm68, %v272
    %s274 = sld [smem:[#allocation3 + $0x34]]
    %s275 = scalar_lea.vmem [#allocation7], %s274
    %v276 = vld [vmem:[%s275] sm:$0x1]
    %277 = vst.msk [vmem:[#allocation2 + $0x34] sm:$0x1] %vm68, %v276
    %s278 = sld [smem:[#allocation3 + $0x35]]
    %s279 = scalar_lea.vmem [#allocation7], %s278
    %v280 = vld [vmem:[%s279] sm:$0x1]
    %281 = vst.msk [vmem:[#allocation2 + $0x35] sm:$0x1] %vm68, %v280
    %s282 = sld [smem:[#allocation3 + $0x36]]
    %s283 = scalar_lea.vmem [#allocation7], %s282
    %v284 = vld [vmem:[%s283] sm:$0x1]
    %285 = vst.msk [vmem:[#allocation2 + $0x36] sm:$0x1] %vm68, %v284
    %s286 = sld [smem:[#allocation3 + $0x37]]
    %s287 = scalar_lea.vmem [#allocation7], %s286
    %v288 = vld [vmem:[%s287] sm:$0x1]
    %289 = vst.msk [vmem:[#allocation2 + $0x37] sm:$0x1] %vm68, %v288
    %s290 = sld [smem:[#allocation3 + $0x38]]
    %s291 = scalar_lea.vmem [#allocation7], %s290
    %v292 = vld [vmem:[%s291] sm:$0x1]
    %293 = vst.msk [vmem:[#allocation2 + $0x38] sm:$0x1] %vm68, %v292
    %s294 = sld [smem:[#allocation3 + $0x39]]
    %s295 = scalar_lea.vmem [#allocation7], %s294
    %v296 = vld [vmem:[%s295] sm:$0x1]
    %297 = vst.msk [vmem:[#allocation2 + $0x39] sm:$0x1] %vm68, %v296
    %s298 = sld [smem:[#allocation3 + $0x3a]]
    %s299 = scalar_lea.vmem [#allocation7], %s298
    %v300 = vld [vmem:[%s299] sm:$0x1]
    %301 = vst.msk [vmem:[#allocation2 + $0x3a] sm:$0x1] %vm68, %v300
    %s302 = sld [smem:[#allocation3 + $0x3b]]
    %s303 = scalar_lea.vmem [#allocation7], %s302
    %v304 = vld [vmem:[%s303] sm:$0x1]
    %305 = vst.msk [vmem:[#allocation2 + $0x3b] sm:$0x1] %vm68, %v304
    %s306 = sld [smem:[#allocation3 + $0x3c]]
    %s307 = scalar_lea.vmem [#allocation7], %s306
    %v308 = vld [vmem:[%s307] sm:$0x1]
    %309 = vst.msk [vmem:[#allocation2 + $0x3c] sm:$0x1] %vm68, %v308
    %s310 = sld [smem:[#allocation3 + $0x3d]]
    %s311 = scalar_lea.vmem [#allocation7], %s310
    %v312 = vld [vmem:[%s311] sm:$0x1]
    %313 = vst.msk [vmem:[#allocation2 + $0x3d] sm:$0x1] %vm68, %v312
    %s314 = sld [smem:[#allocation3 + $0x3e]]
    %s315 = scalar_lea.vmem [#allocation7], %s314
    %v316 = vld [vmem:[%s315] sm:$0x1]
    %317 = vst.msk [vmem:[#allocation2 + $0x3e] sm:$0x1] %vm68, %v316
    %s318 = sld [smem:[#allocation3 + $0x3f]]
    %s319 = scalar_lea.vmem [#allocation7], %s318
    %v320 = vld [vmem:[%s319] sm:$0x1]
    %321 = vst.msk [vmem:[#allocation2 + $0x3f] sm:$0x1] %vm68, %v320
    %v322 = vld [vmem:[%s1] sm:$0xff]
    %v323 = vld [vmem:[#allocation8] sm:$0xff]
    %v324 = vld [vmem:[#allocation8 + $0x8] sm:$0xff]
    %v325 = vld [vmem:[#allocation8 + $0x10] sm:$0xff]
    %v326 = vld [vmem:[#allocation8 + $0x18] sm:$0xff]
    %v327 = vld [vmem:[%s4] sm:$0x1]
    %v328 = vld [vmem:[#allocation2] sm:$0xff]
    %vm329 = vcmask 261120
    %v331 = vsel %vm329, 0.0, 0
    %333 = vmatprep.subr.mxu0 0.0
    %334 = vmatpush1.msra.mxu0 0.0
    %335 = vmatprep.subr.mxu0 0.0
    %336 = vmatpush1.msra.mxu0 0.0
    %337 = vmatprep.subr.mxu0 0.0
    %338 = vmatpush1.msra.mxu0 0.0
    %339 = vmatprep.subr.mxu0 0.0
    %340 = vmatpush1.msra.mxu0 0.0
    %341 = vmatprep.subr.mxu0 0.0
    %342 = vmatpush1.msra.mxu0 0.0
    %343 = vmatprep.subr.mxu0 0.0
    %344 = vmatpush1.msra.mxu0 0.0
    %345 = vmatprep.subr.mxu0 0.0
    %346 = vmatpush1.msra.mxu0 0.0
    %347 = vmatprep.subr.mxu0 0.0
    %348 = vmatpush1.msra.mxu0 0.0
    %349 = vmatprep.subr.mxu0 0.0
    %350 = vmatpush1.msra.mxu0 0.0
    %351 = vmatprep.subr.mxu0 0.0
    %352 = vmatpush1.msra.mxu0 0.0
    %353 = vmatprep.subr.mxu0 0.0
    %354 = vmatpush1.msra.mxu0 0.0
    %355 = vmatprep.subr.mxu0 0.0
    %356 = vmatpush1.msra.mxu0 0.0
    %357 = vmatprep.subr.mxu0 0.0
    %358 = vmatpush1.msra.mxu0 %v326
    %359 = vmatprep.subr.mxu0 0.0
    %360 = vmatpush1.msra.mxu0 %v325
    %361 = vmatprep.subr.mxu0 0.0
    %362 = vmatpush1.msra.mxu0 %v324
    %363 = vmatprep.subr.mxu0 0.0
    %364 = vmatpush1.msra.mxu0 %v323
    %365 = vmatprep.subr.mxu0 0.0
    %366 = vmatpush2.msra.mxu0 0.0
    %367 = vmatprep.subr.mxu0 0.0
    %368 = vmatpush2.msra.mxu0 0.0
    %369 = vmatprep.subr.mxu0 0.0
    %370 = vmatpush2.msra.mxu0 0.0
    %371 = vmatprep.subr.mxu0 0.0
    %372 = vmatpush2.msra.mxu0 0.0
    %373 = vmatprep.subr.mxu0 0.0
    %374 = vmatpush2.msra.mxu0 0.0
    %375 = vmatprep.subr.mxu0 0.0
    %376 = vmatpush2.msra.mxu0 0.0
    %377 = vmatprep.subr.mxu0 0.0
    %378 = vmatpush2.msra.mxu0 0.0
    %379 = vmatprep.subr.mxu0 0.0
    %380 = vmatpush2.msra.mxu0 0.0
    %381 = vmatprep.subr.mxu0 0.0
    %382 = vmatpush2.msra.mxu0 0.0
    %383 = vmatprep.subr.mxu0 0.0
    %384 = vmatpush2.msra.mxu0 0.0
    %385 = vmatprep.subr.mxu0 0.0
    %386 = vmatpush2.msra.mxu0 0.0
    %387 = vmatprep.subr.mxu0 0.0
    %388 = vmatpush2.msra.mxu0 0.0
    %389 = vmatprep.subr.mxu0 0.0
    %390 = vmatpush2.msra.mxu0 0.0
    %391 = vmatprep.subr.mxu0 0.0
    %392 = vmatpush2.msra.mxu0 0.0
    %393 = vmatprep.subr.mxu0 0.0
    %394 = vmatpush2.msra.mxu0 0.0
    %395 = vmatprep.subr.mxu0 0.0
    %396 = vmatpush2.msra.mxu0 0.0
    %397 = vmatprep.mubr.f32.mxu0 0.0
    %398 = vmatmul.mubr.f32.gmra.mxu0 %v331
    %v399 = vpop.f32.mrf.mxu0
    %v400 = vadd.f32 0.0, %v399
    %v401 = vpop.f32.mrf.mxu0
    %402 = vdwg.mxu0
    %v403 = vadd.f32 %v328, %v400
    %v404 = vxor.u32 %v403, 2147483648
    %v405 = vmul.f32 %v404, 1.442695
    %v406 = vpow.pop %v405
    %v407 = vadd.f32 %v406, 1.0
    %v408 = vrcp.pop %v407
    %v409 = vmul.f32 1.0, %v408
    %v411 = vlaneseq
    %v412 = vshrl.u32 %v411, 7
    %v413 = vsub.s32 0, %v412
    %v414 = vrot.slane %v327, %v413
    %415 = vrot.lane.b32.xlu0 %v414, 64
    %v416 = vpop.permute.xlu0 %415
    %v418 = vadd.f32 %v400, %v416
    %420 = vrot.lane.b32.xlu0 %v418, 64
    %v421 = vpop.permute.xlu0 %420
    %v423 = vmul.f32 %v409, %v421
    %425 = vrot.lane.b32.xlu0 %v423, 64
    %v426 = vpop.permute.xlu0 %425
    %v428 = vadd.f32 %v328, %v426
    %v429 = vtanh.pop %v428
    %v430 = vsub.f32 0.0, %v429
    %432 = vrot.lane.b32.xlu0 %v430, 96
    %v433 = vpop.permute.xlu0 %432
    %v435 = vmul.f32 %v409, %v433
    %437 = vrot.lane.b32.xlu0 %v435, 32
    %v438 = vpop.permute.xlu0 %437
    %v440 = vadd.f32 %v429, %v438
    %vm441 = vcmp.gt.s32.totalorder %v322, 0
    %v442 = vsel %vm441, 1, 0
    %443 = vset.pattern.permute.xlu0 0
    %444 = vperm.xlu0 %443, %v442
    %v445 = vpop.permute.xlu0 %444
    %vm446 = vcmp.eq.s32.totalorder %v445, 1
    %v447 = vsel %vm446, %v440, 0.0
    %449 = vrot.lane.b32.xlu0 %v447, 64
    %v450 = vpop.permute.xlu0 %449
    %452 = vst.msk [vmem:[#allocation10] sm:$0xff] %vm329, %v450
    %v453 = vld [vmem:[#allocation2 + $0x8] sm:$0xff]
    %v454 = vsel %vm329, %v450, 0
    %456 = vmatprep.subr.mxu0 0.0
    %457 = vmatpush1.msra.mxu0 0.0
    %458 = vmatprep.subr.mxu0 0.0
    %459 = vmatpush1.msra.mxu0 0.0
    %460 = vmatprep.subr.mxu0 0.0
    %461 = vmatpush1.msra.mxu0 0.0
    %462 = vmatprep.subr.mxu0 0.0
    %463 = vmatpush1.msra.mxu0 0.0
    %464 = vmatprep.subr.mxu0 0.0
    %465 = vmatpush1.msra.mxu0 0.0
    %466 = vmatprep.subr.mxu0 0.0
    %467 = vmatpush1.msra.mxu0 0.0
    %468 = vmatprep.subr.mxu0 0.0
    %469 = vmatpush1.msra.mxu0 0.0
    %470 = vmatprep.subr.mxu0 0.0
    %471 = vmatpush1.msra.mxu0 0.0
    %472 = vmatprep.subr.mxu0 0.0
    %473 = vmatpush1.msra.mxu0 0.0
    %474 = vmatprep.subr.mxu0 0.0
    %475 = vmatpush1.msra.mxu0 0.0
    %476 = vmatprep.subr.mxu0 0.0
    %477 = vmatpush1.msra.mxu0 0.0
    %478 = vmatprep.subr.mxu0 0.0
    %479 = vmatpush1.msra.mxu0 0.0
    %480 = vmatprep.subr.mxu0 0.0
    %481 = vmatpush1.msra.mxu0 %v326
    %482 = vmatprep.subr.mxu0 0.0
    %483 = vmatpush1.msra.mxu0 %v325
    %484 = vmatprep.subr.mxu0 0.0
    %485 = vmatpush1.msra.mxu0 %v324
    %486 = vmatprep.subr.mxu0 0.0
    %487 = vmatpush1.msra.mxu0 %v323
    %488 = vmatprep.subr.mxu0 0.0
    %489 = vmatpush2.msra.mxu0 0.0
    %490 = vmatprep.subr.mxu0 0.0
    %491 = vmatpush2.msra.mxu0 0.0
    %492 = vmatprep.subr.mxu0 0.0
    %493 = vmatpush2.msra.mxu0 0.0
    %494 = vmatprep.subr.mxu0 0.0
    %495 = vmatpush2.msra.mxu0 0.0
    %496 = vmatprep.subr.mxu0 0.0
    %497 = vmatpush2.msra.mxu0 0.0
    %498 = vmatprep.subr.mxu0 0.0
    %499 = vmatpush2.msra.mxu0 0.0
    %500 = vmatprep.subr.mxu0 0.0
    %501 = vmatpush2.msra.mxu0 0.0
    %502 = vmatprep.subr.mxu0 0.0
    %503 = vmatpush2.msra.mxu0 0.0
    %504 = vmatprep.subr.mxu0 0.0
    %505 = vmatpush2.msra.mxu0 0.0
    %506 = vmatprep.subr.mxu0 0.0
    %507 = vmatpush2.msra.mxu0 0.0
    %508 = vmatprep.subr.mxu0 0.0
    %509 = vmatpush2.msra.mxu0 0.0
    %510 = vmatprep.subr.mxu0 0.0
    %511 = vmatpush2.msra.mxu0 0.0
    %512 = vmatprep.subr.mxu0 0.0
    %513 = vmatpush2.msra.mxu0 0.0
    %514 = vmatprep.subr.mxu0 0.0
    %515 = vmatpush2.msra.mxu0 0.0
    %516 = vmatprep.subr.mxu0 0.0
    %517 = vmatpush2.msra.mxu0 0.0
    %518 = vmatprep.subr.mxu0 0.0
    %519 = vmatpush2.msra.mxu0 0.0
    %520 = vmatprep.mubr.f32.mxu0 0.0
    %521 = vmatmul.mubr.f32.gmra.mxu0 %v454
    %v522 = vpop.f32.mrf.mxu0
    %v523 = vadd.f32 0.0, %v522
    %v524 = vpop.f32.mrf.mxu0
    %525 = vdwg.mxu0
    %v526 = vadd.f32 %v453, %v523
    %v527 = vxor.u32 %v526, 2147483648
    %v528 = vmul.f32 %v527, 1.442695
    %v529 = vpow.pop %v528
    %v530 = vadd.f32 %v529, 1.0
    %v531 = vrcp.pop %v530
    %v532 = vmul.f32 1.0, %v531
    %v533 = vadd.f32 %v523, %v416
    %535 = vrot.lane.b32.xlu0 %v533, 64
    %v536 = vpop.permute.xlu0 %535
    %v538 = vmul.f32 %v532, %v536
    %540 = vrot.lane.b32.xlu0 %v538, 64
    %v541 = vpop.permute.xlu0 %540
    %v543 = vadd.f32 %v453, %v541
    %v544 = vtanh.pop %v543
    %v545 = vsub.f32 %v447, %v544
    %547 = vrot.lane.b32.xlu0 %v545, 96
    %v548 = vpop.permute.xlu0 %547
    %v550 = vmul.f32 %v532, %v548
    %552 = vrot.lane.b32.xlu0 %v550, 32
    %v553 = vpop.permute.xlu0 %552
    %v555 = vadd.f32 %v544, %v553
    %vm556 = vcmp.gt.s32.totalorder %v322, 1
    %v557 = vsel %vm556, 1, 0
    %558 = vset.pattern.permute.xlu0 0
    %559 = vperm.xlu0 %558, %v557
    %v560 = vpop.permute.xlu0 %559
    %vm561 = vcmp.eq.s32.totalorder %v560, 1
    %v562 = vsel %vm561, %v555, %v447
    %v563 = vsel %vm561, %v555, 0.0
    %565 = vrot.lane.b32.xlu0 %v563, 96
    %v566 = vpop.permute.xlu0 %565
    %vm568 = vcmask 523520
    %569 = vst.msk [vmem:[#allocation10] sm:$0xff] %vm568, %v566
    %v570 = vld [vmem:[#allocation2 + $0x10] sm:$0xff]
    %572 = vrot.lane.b32.xlu0 %v562, 64
    %v573 = vpop.permute.xlu0 %572
    %v574 = vsel %vm329, %v573, 0
    %576 = vmatprep.subr.mxu0 0.0
    %577 = vmatpush1.msra.mxu0 0.0
    %578 = vmatprep.subr.mxu0 0.0
    %579 = vmatpush1.msra.mxu0 0.0
    %580 = vmatprep.subr.mxu0 0.0
    %581 = vmatpush1.msra.mxu0 0.0
    %582 = vmatprep.subr.mxu0 0.0
    %583 = vmatpush1.msra.mxu0 0.0
    %584 = vmatprep.subr.mxu0 0.0
    %585 = vmatpush1.msra.mxu0 0.0
    %586 = vmatprep.subr.mxu0 0.0
    %587 = vmatpush1.msra.mxu0 0.0
    %588 = vmatprep.subr.mxu0 0.0
    %589 = vmatpush1.msra.mxu0 0.0
    %590 = vmatprep.subr.mxu0 0.0
    %591 = vmatpush1.msra.mxu0 0.0
    %592 = vmatprep.subr.mxu0 0.0
    %593 = vmatpush1.msra.mxu0 0.0
    %594 = vmatprep.subr.mxu0 0.0
    %595 = vmatpush1.msra.mxu0 0.0
    %596 = vmatprep.subr.mxu0 0.0
    %597 = vmatpush1.msra.mxu0 0.0
    %598 = vmatprep.subr.mxu0 0.0
    %599 = vmatpush1.msra.mxu0 0.0
    %600 = vmatprep.subr.mxu0 0.0
    %601 = vmatpush1.msra.mxu0 %v326
    %602 = vmatprep.subr.mxu0 0.0
    %603 = vmatpush1.msra.mxu0 %v325
    %604 = vmatprep.subr.mxu0 0.0
    %605 = vmatpush1.msra.mxu0 %v324
    %606 = vmatprep.subr.mxu0 0.0
    %607 = vmatpush1.msra.mxu0 %v323
    %608 = vmatprep.subr.mxu0 0.0
    %609 = vmatpush2.msra.mxu0 0.0
    %610 = vmatprep.subr.mxu0 0.0
    %611 = vmatpush2.msra.mxu0 0.0
    %612 = vmatprep.subr.mxu0 0.0
    %613 = vmatpush2.msra.mxu0 0.0
    %614 = vmatprep.subr.mxu0 0.0
    %615 = vmatpush2.msra.mxu0 0.0
    %616 = vmatprep.subr.mxu0 0.0
    %617 = vmatpush2.msra.mxu0 0.0
    %618 = vmatprep.subr.mxu0 0.0
    %619 = vmatpush2.msra.mxu0 0.0
    %620 = vmatprep.subr.mxu0 0.0
    %621 = vmatpush2.msra.mxu0 0.0
    %622 = vmatprep.subr.mxu0 0.0
    %623 = vmatpush2.msra.mxu0 0.0
    %624 = vmatprep.subr.mxu0 0.0
    %625 = vmatpush2.msra.mxu0 0.0
    %626 = vmatprep.subr.mxu0 0.0
    %627 = vmatpush2.msra.mxu0 0.0
    %628 = vmatprep.subr.mxu0 0.0
    %629 = vmatpush2.msra.mxu0 0.0
    %630 = vmatprep.subr.mxu0 0.0
    %631 = vmatpush2.msra.mxu0 0.0
    %632 = vmatprep.subr.mxu0 0.0
    %633 = vmatpush2.msra.mxu0 0.0
    %634 = vmatprep.subr.mxu0 0.0
    %635 = vmatpush2.msra.mxu0 0.0
    %636 = vmatprep.subr.mxu0 0.0
    %637 = vmatpush2.msra.mxu0 0.0
    %638 = vmatprep.subr.mxu0 0.0
    %639 = vmatpush2.msra.mxu0 0.0
    %640 = vmatprep.mubr.f32.mxu0 0.0
    %641 = vmatmul.mubr.f32.gmra.mxu0 %v574
    %v642 = vpop.f32.mrf.mxu0
    %v643 = vadd.f32 0.0, %v642
    %v644 = vpop.f32.mrf.mxu0
    %645 = vdwg.mxu0
    %v646 = vadd.f32 %v570, %v643
    %v647 = vxor.u32 %v646, 2147483648
    %v648 = vmul.f32 %v647, 1.442695
    %v649 = vpow.pop %v648
    %v650 = vadd.f32 %v649, 1.0
    %v651 = vrcp.pop %v650
    %v652 = vmul.f32 1.0, %v651
    %v653 = vadd.f32 %v643, %v416
    %655 = vrot.lane.b32.xlu0 %v653, 64
    %v656 = vpop.permute.xlu0 %655
    %v658 = vmul.f32 %v652, %v656
    %660 = vrot.lane.b32.xlu0 %v658, 64
    %v661 = vpop.permute.xlu0 %660
    %v663 = vadd.f32 %v570, %v661
    %v664 = vtanh.pop %v663
    %v665 = vsub.f32 %v562, %v664
    %667 = vrot.lane.b32.xlu0 %v665, 96
    %v668 = vpop.permute.xlu0 %667
    %v670 = vmul.f32 %v652, %v668
    %672 = vrot.lane.b32.xlu0 %v670, 32
    %v673 = vpop.permute.xlu0 %672
    %v675 = vadd.f32 %v664, %v673
    %vm676 = vcmp.gt.s32.totalorder %v322, 2
    %v677 = vsel %vm676, 1, 0
    %678 = vset.pattern.permute.xlu0 0
    %679 = vperm.xlu0 %678, %v677
    %v680 = vpop.permute.xlu0 %679
    %vm681 = vcmp.eq.s32.totalorder %v680, 1
    %v682 = vsel %vm681, %v675, %v562
    %v683 = vsel %vm681, %v675, 0.0
    %vm684 = vcmask 785920
    %685 = vst.msk [vmem:[#allocation10] sm:$0xff] %vm684, %v683
    %v686 = vld [vmem:[#allocation2 + $0x18] sm:$0xff]
    %688 = vrot.lane.b32.xlu0 %v682, 64
    %v689 = vpop.permute.xlu0 %688
    %v690 = vsel %vm329, %v689, 0
    %692 = vmatprep.subr.mxu0 0.0
    %693 = vmatpush1.msra.mxu0 0.0
    %694 = vmatprep.subr.mxu0 0.0
    %695 = vmatpush1.msra.mxu0 0.0
    %696 = vmatprep.subr.mxu0 0.0
    %697 = vmatpush1.msra.mxu0 0.0
    %698 = vmatprep.subr.mxu0 0.0
    %699 = vmatpush1.msra.mxu0 0.0
    %700 = vmatprep.subr.mxu0 0.0
    %701 = vmatpush1.msra.mxu0 0.0
    %702 = vmatprep.subr.mxu0 0.0
    %703 = vmatpush1.msra.mxu0 0.0
    %704 = vmatprep.subr.mxu0 0.0
    %705 = vmatpush1.msra.mxu0 0.0
    %706 = vmatprep.subr.mxu0 0.0
    %707 = vmatpush1.msra.mxu0 0.0
    %708 = vmatprep.subr.mxu0 0.0
    %709 = vmatpush1.msra.mxu0 0.0
    %710 = vmatprep.subr.mxu0 0.0
    %711 = vmatpush1.msra.mxu0 0.0
    %712 = vmatprep.subr.mxu0 0.0
    %713 = vmatpush1.msra.mxu0 0.0
    %714 = vmatprep.subr.mxu0 0.0
    %715 = vmatpush1.msra.mxu0 0.0
    %716 = vmatprep.subr.mxu0 0.0
    %717 = vmatpush1.msra.mxu0 %v326
    %718 = vmatprep.subr.mxu0 0.0
    %719 = vmatpush1.msra.mxu0 %v325
    %720 = vmatprep.subr.mxu0 0.0
    %721 = vmatpush1.msra.mxu0 %v324
    %722 = vmatprep.subr.mxu0 0.0
    %723 = vmatpush1.msra.mxu0 %v323
    %724 = vmatprep.subr.mxu0 0.0
    %725 = vmatpush2.msra.mxu0 0.0
    %726 = vmatprep.subr.mxu0 0.0
    %727 = vmatpush2.msra.mxu0 0.0
    %728 = vmatprep.subr.mxu0 0.0
    %729 = vmatpush2.msra.mxu0 0.0
    %730 = vmatprep.subr.mxu0 0.0
    %731 = vmatpush2.msra.mxu0 0.0
    %732 = vmatprep.subr.mxu0 0.0
    %733 = vmatpush2.msra.mxu0 0.0
    %734 = vmatprep.subr.mxu0 0.0
    %735 = vmatpush2.msra.mxu0 0.0
    %736 = vmatprep.subr.mxu0 0.0
    %737 = vmatpush2.msra.mxu0 0.0
    %738 = vmatprep.subr.mxu0 0.0
    %739 = vmatpush2.msra.mxu0 0.0
    %740 = vmatprep.subr.mxu0 0.0
    %741 = vmatpush2.msra.mxu0 0.0
    %742 = vmatprep.subr.mxu0 0.0
    %743 = vmatpush2.msra.mxu0 0.0
    %744 = vmatprep.subr.mxu0 0.0
    %745 = vmatpush2.msra.mxu0 0.0
    %746 = vmatprep.subr.mxu0 0.0
    %747 = vmatpush2.msra.mxu0 0.0
    %748 = vmatprep.subr.mxu0 0.0
    %749 = vmatpush2.msra.mxu0 0.0
    %750 = vmatprep.subr.mxu0 0.0
    %751 = vmatpush2.msra.mxu0 0.0
    %752 = vmatprep.subr.mxu0 0.0
    %753 = vmatpush2.msra.mxu0 0.0
    %754 = vmatprep.subr.mxu0 0.0
    %755 = vmatpush2.msra.mxu0 0.0
    %756 = vmatprep.mubr.f32.mxu0 0.0
    %757 = vmatmul.mubr.f32.gmra.mxu0 %v690
    %v758 = vpop.f32.mrf.mxu0
    %v759 = vadd.f32 0.0, %v758
    %v760 = vpop.f32.mrf.mxu0
    %761 = vdwg.mxu0
    %v762 = vadd.f32 %v686, %v759
    %v763 = vxor.u32 %v762, 2147483648
    %v764 = vmul.f32 %v763, 1.442695
    %v765 = vpow.pop %v764
    %v766 = vadd.f32 %v765, 1.0
    %v767 = vrcp.pop %v766
    %v768 = vmul.f32 1.0, %v767
    %v769 = vadd.f32 %v759, %v416
    %771 = vrot.lane.b32.xlu0 %v769, 64
    %v772 = vpop.permute.xlu0 %771
    %v774 = vmul.f32 %v768, %v772
    %776 = vrot.lane.b32.xlu0 %v774, 64
    %v777 = vpop.permute.xlu0 %776
    %v779 = vadd.f32 %v686, %v777
    %v780 = vtanh.pop %v779
    %v781 = vsub.f32 %v682, %v780
    %783 = vrot.lane.b32.xlu0 %v781, 96
    %v784 = vpop.permute.xlu0 %783
    %v786 = vmul.f32 %v768, %v784
    %788 = vrot.lane.b32.xlu0 %v786, 32
    %v789 = vpop.permute.xlu0 %788
    %v791 = vadd.f32 %v780, %v789
    %vm792 = vcmp.gt.s32.totalorder %v322, 3
    %v793 = vsel %vm792, 1, 0
    %794 = vset.pattern.permute.xlu0 0
    %795 = vperm.xlu0 %794, %v793
    %v796 = vpop.permute.xlu0 %795
    %vm797 = vcmp.eq.s32.totalorder %v796, 1
    %v798 = vsel %vm797, %v791, %v682
    %v799 = vsel %vm797, %v791, 0.0
    %801 = vrot.lane.b32.xlu0 %v799, 32
    %v802 = vpop.permute.xlu0 %801
    %vm804 = vcmask 1048320
    %805 = vst.msk [vmem:[#allocation10] sm:$0xff] %vm804, %v802
    %v806 = vld [vmem:[#allocation2 + $0x20] sm:$0xff]
    %808 = vrot.lane.b32.xlu0 %v798, 64
    %v809 = vpop.permute.xlu0 %808
    %v810 = vsel %vm329, %v809, 0
    %812 = vmatprep.subr.mxu0 0.0
    %813 = vmatpush1.msra.mxu0 0.0
    %814 = vmatprep.subr.mxu0 0.0
    %815 = vmatpush1.msra.mxu0 0.0
    %816 = vmatprep.subr.mxu0 0.0
    %817 = vmatpush1.msra.mxu0 0.0
    %818 = vmatprep.subr.mxu0 0.0
    %819 = vmatpush1.msra.mxu0 0.0
    %820 = vmatprep.subr.mxu0 0.0
    %821 = vmatpush1.msra.mxu0 0.0
    %822 = vmatprep.subr.mxu0 0.0
    %823 = vmatpush1.msra.mxu0 0.0
    %824 = vmatprep.subr.mxu0 0.0
    %825 = vmatpush1.msra.mxu0 0.0
    %826 = vmatprep.subr.mxu0 0.0
    %827 = vmatpush1.msra.mxu0 0.0
    %828 = vmatprep.subr.mxu0 0.0
    %829 = vmatpush1.msra.mxu0 0.0
    %830 = vmatprep.subr.mxu0 0.0
    %831 = vmatpush1.msra.mxu0 0.0
    %832 = vmatprep.subr.mxu0 0.0
    %833 = vmatpush1.msra.mxu0 0.0
    %834 = vmatprep.subr.mxu0 0.0
    %835 = vmatpush1.msra.mxu0 0.0
    %836 = vmatprep.subr.mxu0 0.0
    %837 = vmatpush1.msra.mxu0 %v326
    %838 = vmatprep.subr.mxu0 0.0
    %839 = vmatpush1.msra.mxu0 %v325
    %840 = vmatprep.subr.mxu0 0.0
    %841 = vmatpush1.msra.mxu0 %v324
    %842 = vmatprep.subr.mxu0 0.0
    %843 = vmatpush1.msra.mxu0 %v323
    %844 = vmatprep.subr.mxu0 0.0
    %845 = vmatpush2.msra.mxu0 0.0
    %846 = vmatprep.subr.mxu0 0.0
    %847 = vmatpush2.msra.mxu0 0.0
    %848 = vmatprep.subr.mxu0 0.0
    %849 = vmatpush2.msra.mxu0 0.0
    %850 = vmatprep.subr.mxu0 0.0
    %851 = vmatpush2.msra.mxu0 0.0
    %852 = vmatprep.subr.mxu0 0.0
    %853 = vmatpush2.msra.mxu0 0.0
    %854 = vmatprep.subr.mxu0 0.0
    %855 = vmatpush2.msra.mxu0 0.0
    %856 = vmatprep.subr.mxu0 0.0
    %857 = vmatpush2.msra.mxu0 0.0
    %858 = vmatprep.subr.mxu0 0.0
    %859 = vmatpush2.msra.mxu0 0.0
    %860 = vmatprep.subr.mxu0 0.0
    %861 = vmatpush2.msra.mxu0 0.0
    %862 = vmatprep.subr.mxu0 0.0
    %863 = vmatpush2.msra.mxu0 0.0
    %864 = vmatprep.subr.mxu0 0.0
    %865 = vmatpush2.msra.mxu0 0.0
    %866 = vmatprep.subr.mxu0 0.0
    %867 = vmatpush2.msra.mxu0 0.0
    %868 = vmatprep.subr.mxu0 0.0
    %869 = vmatpush2.msra.mxu0 0.0
    %870 = vmatprep.subr.mxu0 0.0
    %871 = vmatpush2.msra.mxu0 0.0
    %872 = vmatprep.subr.mxu0 0.0
    %873 = vmatpush2.msra.mxu0 0.0
    %874 = vmatprep.subr.mxu0 0.0
    %875 = vmatpush2.msra.mxu0 0.0
    %876 = vmatprep.mubr.f32.mxu0 0.0
    %877 = vmatmul.mubr.f32.gmra.mxu0 %v810
    %v878 = vpop.f32.mrf.mxu0
    %v879 = vadd.f32 0.0, %v878
    %v880 = vpop.f32.mrf.mxu0
    %881 = vdwg.mxu0
    %v882 = vadd.f32 %v806, %v879
    %v883 = vxor.u32 %v882, 2147483648
    %v884 = vmul.f32 %v883, 1.442695
    %v885 = vpow.pop %v884
    %v886 = vadd.f32 %v885, 1.0
    %v887 = vrcp.pop %v886
    %v888 = vmul.f32 1.0, %v887
    %v889 = vadd.f32 %v879, %v416
    %891 = vrot.lane.b32.xlu0 %v889, 64
    %v892 = vpop.permute.xlu0 %891
    %v894 = vmul.f32 %v888, %v892
    %896 = vrot.lane.b32.xlu0 %v894, 64
    %v897 = vpop.permute.xlu0 %896
    %v899 = vadd.f32 %v806, %v897
    %v900 = vtanh.pop %v899
    %v901 = vsub.f32 %v798, %v900
    %903 = vrot.lane.b32.xlu0 %v901, 96
    %v904 = vpop.permute.xlu0 %903
    %v906 = vmul.f32 %v888, %v904
    %908 = vrot.lane.b32.xlu0 %v906, 32
    %v909 = vpop.permute.xlu0 %908
    %v911 = vadd.f32 %v900, %v909
    %vm912 = vcmp.gt.s32.totalorder %v322, 4
    %v913 = vsel %vm912, 1, 0
    %914 = vset.pattern.permute.xlu0 0
    %915 = vperm.xlu0 %914, %v913
    %v916 = vpop.permute.xlu0 %915
    %vm917 = vcmp.eq.s32.totalorder %v916, 1
    %v918 = vsel %vm917, %v911, %v798
    %v919 = vsel %vm917, %v911, 0.0
    %921 = vrot.lane.b32.xlu0 %v919, 64
    %v922 = vpop.permute.xlu0 %921
    %924 = vst.msk [vmem:[#allocation10 + $0x8] sm:$0xff] %vm329, %v922
    %v925 = vld [vmem:[#allocation2 + $0x28] sm:$0xff]
    %927 = vrot.lane.b32.xlu0 %v918, 64
    %v928 = vpop.permute.xlu0 %927
    %v929 = vsel %vm329, %v928, 0
    %931 = vmatprep.subr.mxu0 0.0
    %932 = vmatpush1.msra.mxu0 0.0
    %933 = vmatprep.subr.mxu0 0.0
    %934 = vmatpush1.msra.mxu0 0.0
    %935 = vmatprep.subr.mxu0 0.0
    %936 = vmatpush1.msra.mxu0 0.0
    %937 = vmatprep.subr.mxu0 0.0
    %938 = vmatpush1.msra.mxu0 0.0
    %939 = vmatprep.subr.mxu0 0.0
    %940 = vmatpush1.msra.mxu0 0.0
    %941 = vmatprep.subr.mxu0 0.0
    %942 = vmatpush1.msra.mxu0 0.0
    %943 = vmatprep.subr.mxu0 0.0
    %944 = vmatpush1.msra.mxu0 0.0
    %945 = vmatprep.subr.mxu0 0.0
    %946 = vmatpush1.msra.mxu0 0.0
    %947 = vmatprep.subr.mxu0 0.0
    %948 = vmatpush1.msra.mxu0 0.0
    %949 = vmatprep.subr.mxu0 0.0
    %950 = vmatpush1.msra.mxu0 0.0
    %951 = vmatprep.subr.mxu0 0.0
    %952 = vmatpush1.msra.mxu0 0.0
    %953 = vmatprep.subr.mxu0 0.0
    %954 = vmatpush1.msra.mxu0 0.0
    %955 = vmatprep.subr.mxu0 0.0
    %956 = vmatpush1.msra.mxu0 %v326
    %957 = vmatprep.subr.mxu0 0.0
    %958 = vmatpush1.msra.mxu0 %v325
    %959 = vmatprep.subr.mxu0 0.0
    %960 = vmatpush1.msra.mxu0 %v324
    %961 = vmatprep.subr.mxu0 0.0
    %962 = vmatpush1.msra.mxu0 %v323
    %963 = vmatprep.subr.mxu0 0.0
    %964 = vmatpush2.msra.mxu0 0.0
    %965 = vmatprep.subr.mxu0 0.0
    %966 = vmatpush2.msra.mxu0 0.0
    %967 = vmatprep.subr.mxu0 0.0
    %968 = vmatpush2.msra.mxu0 0.0
    %969 = vmatprep.subr.mxu0 0.0
    %970 = vmatpush2.msra.mxu0 0.0
    %971 = vmatprep.subr.mxu0 0.0
    %972 = vmatpush2.msra.mxu0 0.0
    %973 = vmatprep.subr.mxu0 0.0
    %974 = vmatpush2.msra.mxu0 0.0
    %975 = vmatprep.subr.mxu0 0.0
    %976 = vmatpush2.msra.mxu0 0.0
    %977 = vmatprep.subr.mxu0 0.0
    %978 = vmatpush2.msra.mxu0 0.0
    %979 = vmatprep.subr.mxu0 0.0
    %980 = vmatpush2.msra.mxu0 0.0
    %981 = vmatprep.subr.mxu0 0.0
    %982 = vmatpush2.msra.mxu0 0.0
    %983 = vmatprep.subr.mxu0 0.0
    %984 = vmatpush2.msra.mxu0 0.0
    %985 = vmatprep.subr.mxu0 0.0
    %986 = vmatpush2.msra.mxu0 0.0
    %987 = vmatprep.subr.mxu0 0.0
    %988 = vmatpush2.msra.mxu0 0.0
    %989 = vmatprep.subr.mxu0 0.0
    %990 = vmatpush2.msra.mxu0 0.0
    %991 = vmatprep.subr.mxu0 0.0
    %992 = vmatpush2.msra.mxu0 0.0
    %993 = vmatprep.subr.mxu0 0.0
    %994 = vmatpush2.msra.mxu0 0.0
    %995 = vmatprep.mubr.f32.mxu0 0.0
    %996 = vmatmul.mubr.f32.gmra.mxu0 %v929
    %v997 = vpop.f32.mrf.mxu0
    %v998 = vadd.f32 0.0, %v997
    %v999 = vpop.f32.mrf.mxu0
    %1000 = vdwg.mxu0
    %v1001 = vadd.f32 %v925, %v998
    %v1002 = vxor.u32 %v1001, 2147483648
    %v1003 = vmul.f32 %v1002, 1.442695
    %v1004 = vpow.pop %v1003
    %v1005 = vadd.f32 %v1004, 1.0
    %v1006 = vrcp.pop %v1005
    %v1007 = vmul.f32 1.0, %v1006
    %v1008 = vadd.f32 %v998, %v416
    %1010 = vrot.lane.b32.xlu0 %v1008, 64
    %v1011 = vpop.permute.xlu0 %1010
    %v1013 = vmul.f32 %v1007, %v1011
    %1015 = vrot.lane.b32.xlu0 %v1013, 64
    %v1016 = vpop.permute.xlu0 %1015
    %v1018 = vadd.f32 %v925, %v1016
    %v1019 = vtanh.pop %v1018
    %v1020 = vsub.f32 %v918, %v1019
    %1022 = vrot.lane.b32.xlu0 %v1020, 96
    %v1023 = vpop.permute.xlu0 %1022
    %v1025 = vmul.f32 %v1007, %v1023
    %1027 = vrot.lane.b32.xlu0 %v1025, 32
    %v1028 = vpop.permute.xlu0 %1027
    %v1030 = vadd.f32 %v1019, %v1028
    %vm1031 = vcmp.gt.s32.totalorder %v322, 5
    %v1032 = vsel %vm1031, 1, 0
    %1033 = vset.pattern.permute.xlu0 0
    %1034 = vperm.xlu0 %1033, %v1032
    %v1035 = vpop.permute.xlu0 %1034
    %vm1036 = vcmp.eq.s32.totalorder %v1035, 1
    %v1037 = vsel %vm1036, %v1030, %v918
    %v1038 = vsel %vm1036, %v1030, 0.0
    %1040 = vrot.lane.b32.xlu0 %v1038, 96
    %v1041 = vpop.permute.xlu0 %1040
    %1043 = vst.msk [vmem:[#allocation10 + $0x8] sm:$0xff] %vm568, %v1041
    %v1044 = vld [vmem:[#allocation2 + $0x30] sm:$0xff]
    %1046 = vrot.lane.b32.xlu0 %v1037, 64
    %v1047 = vpop.permute.xlu0 %1046
    %v1048 = vsel %vm329, %v1047, 0
    %1050 = vmatprep.subr.mxu0 0.0
    %1051 = vmatpush1.msra.mxu0 0.0
    %1052 = vmatprep.subr.mxu0 0.0
    %1053 = vmatpush1.msra.mxu0 0.0
    %1054 = vmatprep.subr.mxu0 0.0
    %1055 = vmatpush1.msra.mxu0 0.0
    %1056 = vmatprep.subr.mxu0 0.0
    %1057 = vmatpush1.msra.mxu0 0.0
    %1058 = vmatprep.subr.mxu0 0.0
    %1059 = vmatpush1.msra.mxu0 0.0
    %1060 = vmatprep.subr.mxu0 0.0
    %1061 = vmatpush1.msra.mxu0 0.0
    %1062 = vmatprep.subr.mxu0 0.0
    %1063 = vmatpush1.msra.mxu0 0.0
    %1064 = vmatprep.subr.mxu0 0.0
    %1065 = vmatpush1.msra.mxu0 0.0
    %1066 = vmatprep.subr.mxu0 0.0
    %1067 = vmatpush1.msra.mxu0 0.0
    %1068 = vmatprep.subr.mxu0 0.0
    %1069 = vmatpush1.msra.mxu0 0.0
    %1070 = vmatprep.subr.mxu0 0.0
    %1071 = vmatpush1.msra.mxu0 0.0
    %1072 = vmatprep.subr.mxu0 0.0
    %1073 = vmatpush1.msra.mxu0 0.0
    %1074 = vmatprep.subr.mxu0 0.0
    %1075 = vmatpush1.msra.mxu0 %v326
    %1076 = vmatprep.subr.mxu0 0.0
    %1077 = vmatpush1.msra.mxu0 %v325
    %1078 = vmatprep.subr.mxu0 0.0
    %1079 = vmatpush1.msra.mxu0 %v324
    %1080 = vmatprep.subr.mxu0 0.0
    %1081 = vmatpush1.msra.mxu0 %v323
    %1082 = vmatprep.subr.mxu0 0.0
    %1083 = vmatpush2.msra.mxu0 0.0
    %1084 = vmatprep.subr.mxu0 0.0
    %1085 = vmatpush2.msra.mxu0 0.0
    %1086 = vmatprep.subr.mxu0 0.0
    %1087 = vmatpush2.msra.mxu0 0.0
    %1088 = vmatprep.subr.mxu0 0.0
    %1089 = vmatpush2.msra.mxu0 0.0
    %1090 = vmatprep.subr.mxu0 0.0
    %1091 = vmatpush2.msra.mxu0 0.0
    %1092 = vmatprep.subr.mxu0 0.0
    %1093 = vmatpush2.msra.mxu0 0.0
    %1094 = vmatprep.subr.mxu0 0.0
    %1095 = vmatpush2.msra.mxu0 0.0
    %1096 = vmatprep.subr.mxu0 0.0
    %1097 = vmatpush2.msra.mxu0 0.0
    %1098 = vmatprep.subr.mxu0 0.0
    %1099 = vmatpush2.msra.mxu0 0.0
    %1100 = vmatprep.subr.mxu0 0.0
    %1101 = vmatpush2.msra.mxu0 0.0
    %1102 = vmatprep.subr.mxu0 0.0
    %1103 = vmatpush2.msra.mxu0 0.0
    %1104 = vmatprep.subr.mxu0 0.0
    %1105 = vmatpush2.msra.mxu0 0.0
    %1106 = vmatprep.subr.mxu0 0.0
    %1107 = vmatpush2.msra.mxu0 0.0
    %1108 = vmatprep.subr.mxu0 0.0
    %1109 = vmatpush2.msra.mxu0 0.0
    %1110 = vmatprep.subr.mxu0 0.0
    %1111 = vmatpush2.msra.mxu0 0.0
    %1112 = vmatprep.subr.mxu0 0.0
    %1113 = vmatpush2.msra.mxu0 0.0
    %1114 = vmatprep.mubr.f32.mxu0 0.0
    %1115 = vmatmul.mubr.f32.gmra.mxu0 %v1048
    %v1116 = vpop.f32.mrf.mxu0
    %v1117 = vadd.f32 0.0, %v1116
    %v1118 = vpop.f32.mrf.mxu0
    %1119 = vdwg.mxu0
    %v1120 = vadd.f32 %v1044, %v1117
    %v1121 = vxor.u32 %v1120, 2147483648
    %v1122 = vmul.f32 %v1121, 1.442695
    %v1123 = vpow.pop %v1122
    %v1124 = vadd.f32 %v1123, 1.0
    %v1125 = vrcp.pop %v1124
    %v1126 = vmul.f32 1.0, %v1125
    %v1127 = vadd.f32 %v1117, %v416
    %1129 = vrot.lane.b32.xlu0 %v1127, 64
    %v1130 = vpop.permute.xlu0 %1129
    %v1132 = vmul.f32 %v1126, %v1130
    %1134 = vrot.lane.b32.xlu0 %v1132, 64
    %v1135 = vpop.permute.xlu0 %1134
    %v1137 = vadd.f32 %v1044, %v1135
    %v1138 = vtanh.pop %v1137
    %v1139 = vsub.f32 %v1037, %v1138
    %1141 = vrot.lane.b32.xlu0 %v1139, 96
    %v1142 = vpop.permute.xlu0 %1141
    %v1144 = vmul.f32 %v1126, %v1142
    %1146 = vrot.lane.b32.xlu0 %v1144, 32
    %v1147 = vpop.permute.xlu0 %1146
    %v1149 = vadd.f32 %v1138, %v1147
    %vm1150 = vcmp.gt.s32.totalorder %v322, 6
    %v1151 = vsel %vm1150, 1, 0
    %1152 = vset.pattern.permute.xlu0 0
    %1153 = vperm.xlu0 %1152, %v1151
    %v1154 = vpop.permute.xlu0 %1153
    %vm1155 = vcmp.eq.s32.totalorder %v1154, 1
    %v1156 = vsel %vm1155, %v1149, %v1037
    %v1157 = vsel %vm1155, %v1149, 0.0
    %1158 = vst.msk [vmem:[#allocation10 + $0x8] sm:$0xff] %vm684, %v1157
    %v1159 = vld [vmem:[#allocation2 + $0x38] sm:$0xff]
    %1161 = vrot.lane.b32.xlu0 %v1156, 64
    %v1162 = vpop.permute.xlu0 %1161
    %v1163 = vsel %vm329, %v1162, 0
    %1165 = vmatprep.subr.mxu0 0.0
    %1166 = vmatpush1.msra.mxu0 0.0
    %1167 = vmatprep.subr.mxu0 0.0
    %1168 = vmatpush1.msra.mxu0 0.0
    %1169 = vmatprep.subr.mxu0 0.0
    %1170 = vmatpush1.msra.mxu0 0.0
    %1171 = vmatprep.subr.mxu0 0.0
    %1172 = vmatpush1.msra.mxu0 0.0
    %1173 = vmatprep.subr.mxu0 0.0
    %1174 = vmatpush1.msra.mxu0 0.0
    %1175 = vmatprep.subr.mxu0 0.0
    %1176 = vmatpush1.msra.mxu0 0.0
    %1177 = vmatprep.subr.mxu0 0.0
    %1178 = vmatpush1.msra.mxu0 0.0
    %1179 = vmatprep.subr.mxu0 0.0
    %1180 = vmatpush1.msra.mxu0 0.0
    %1181 = vmatprep.subr.mxu0 0.0
    %1182 = vmatpush1.msra.mxu0 0.0
    %1183 = vmatprep.subr.mxu0 0.0
    %1184 = vmatpush1.msra.mxu0 0.0
    %1185 = vmatprep.subr.mxu0 0.0
    %1186 = vmatpush1.msra.mxu0 0.0
    %1187 = vmatprep.subr.mxu0 0.0
    %1188 = vmatpush1.msra.mxu0 0.0
    %1189 = vmatprep.subr.mxu0 0.0
    %1190 = vmatpush1.msra.mxu0 %v326
    %1191 = vmatprep.subr.mxu0 0.0
    %1192 = vmatpush1.msra.mxu0 %v325
    %1193 = vmatprep.subr.mxu0 0.0
    %1194 = vmatpush1.msra.mxu0 %v324
    %1195 = vmatprep.subr.mxu0 0.0
    %1196 = vmatpush1.msra.mxu0 %v323
    %1197 = vmatprep.subr.mxu0 0.0
    %1198 = vmatpush2.msra.mxu0 0.0
    %1199 = vmatprep.subr.mxu0 0.0
    %1200 = vmatpush2.msra.mxu0 0.0
    %1201 = vmatprep.subr.mxu0 0.0
    %1202 = vmatpush2.msra.mxu0 0.0
    %1203 = vmatprep.subr.mxu0 0.0
    %1204 = vmatpush2.msra.mxu0 0.0
    %1205 = vmatprep.subr.mxu0 0.0
    %1206 = vmatpush2.msra.mxu0 0.0
    %1207 = vmatprep.subr.mxu0 0.0
    %1208 = vmatpush2.msra.mxu0 0.0
    %1209 = vmatprep.subr.mxu0 0.0
    %1210 = vmatpush2.msra.mxu0 0.0
    %1211 = vmatprep.subr.mxu0 0.0
    %1212 = vmatpush2.msra.mxu0 0.0
    %1213 = vmatprep.subr.mxu0 0.0
    %1214 = vmatpush2.msra.mxu0 0.0
    %1215 = vmatprep.subr.mxu0 0.0
    %1216 = vmatpush2.msra.mxu0 0.0
    %1217 = vmatprep.subr.mxu0 0.0
    %1218 = vmatpush2.msra.mxu0 0.0
    %1219 = vmatprep.subr.mxu0 0.0
    %1220 = vmatpush2.msra.mxu0 0.0
    %1221 = vmatprep.subr.mxu0 0.0
    %1222 = vmatpush2.msra.mxu0 0.0
    %1223 = vmatprep.subr.mxu0 0.0
    %1224 = vmatpush2.msra.mxu0 0.0
    %1225 = vmatprep.subr.mxu0 0.0
    %1226 = vmatpush2.msra.mxu0 0.0
    %1227 = vmatprep.subr.mxu0 0.0
    %1228 = vmatpush2.msra.mxu0 0.0
    %1229 = vmatprep.mubr.f32.mxu0 0.0
    %1230 = vmatmul.mubr.f32.gmra.mxu0 %v1163
    %v1231 = vpop.f32.mrf.mxu0
    %v1232 = vadd.f32 0.0, %v1231
    %v1233 = vpop.f32.mrf.mxu0
    %1234 = vdwg.mxu0
    %v1235 = vadd.f32 %v1159, %v1232
    %v1236 = vxor.u32 %v1235, 2147483648
    %v1237 = vmul.f32 %v1236, 1.442695
    %v1238 = vpow.pop %v1237
    %v1239 = vadd.f32 %v1238, 1.0
    %v1240 = vrcp.pop %v1239
    %v1241 = vmul.f32 1.0, %v1240
    %v1242 = vadd.f32 %v1232, %v416
    %1244 = vrot.lane.b32.xlu0 %v1242, 64
    %v1245 = vpop.permute.xlu0 %1244
    %v1247 = vmul.f32 %v1241, %v1245
    %1249 = vrot.lane.b32.xlu0 %v1247, 64
    %v1250 = vpop.permute.xlu0 %1249
    %v1252 = vadd.f32 %v1159, %v1250
    %v1253 = vtanh.pop %v1252
    %v1254 = vsub.f32 %v1156, %v1253
    %1256 = vrot.lane.b32.xlu0 %v1254, 96
    %v1257 = vpop.permute.xlu0 %1256
    %v1259 = vmul.f32 %v1241, %v1257
    %1261 = vrot.lane.b32.xlu0 %v1259, 32
    %v1262 = vpop.permute.xlu0 %1261
    %v1264 = vadd.f32 %v1253, %v1262
    %vm1265 = vcmp.gt.s32.totalorder %v322, 7
    %v1266 = vsel %vm1265, 1, 0
    %1267 = vset.pattern.permute.xlu0 0
    %1268 = vperm.xlu0 %1267, %v1266
    %v1269 = vpop.permute.xlu0 %1268
    %vm1270 = vcmp.eq.s32.totalorder %v1269, 1
    %v1271 = vsel %vm1270, %v1264, %v1156
    %v1272 = vsel %vm1270, %v1264, 0.0
    %1274 = vrot.lane.b32.xlu0 %v1272, 32
    %v1275 = vpop.permute.xlu0 %1274
    %1277 = vst.msk [vmem:[#allocation10 + $0x8] sm:$0xff] %vm804, %v1275
    %1279 = vrot.lane.b32.xlu0 %v1271, 64
    %v1280 = vpop.permute.xlu0 %1279
    %1282 = vst.msk [vmem:[#allocation11] sm:$0xff] %vm329, %v1280
    // Predicated region
    $region34: #{tpu_custom_call.1} parent=1 // pred_check
      _
    $region35: #{tpu_custom_call.1} parent=1 // pred_check_branch
      %1284 = sbr.rel (0) target = $region37
    $region36: #{tpu_custom_call.1} parent=1 // pred_region
      %s1286 = ssub.s32 256, 256
      %1287 = vsyncadd [#allocation5], %s1286
      %s1289 = sshll.u32 [#allocation10], 4
      %s1290 = int_to_ptr.vmem [resolvable:$true] %s1289
      %1292 = dma.vmem_to_hbm [thread:$0]  %s1290, 256, %s5, [#allocation5]
    $region37: #{tpu_custom_call.1} parent=1 // pred_fallthru
      _
    // Predicated region
    $region38: #{tpu_custom_call.1} parent=1 // pred_check
      _
    $region39: #{tpu_custom_call.1} parent=1 // pred_check_branch
      %1294 = sbr.rel (0) target = $region41
    $region40: #{tpu_custom_call.1} parent=1 // pred_region
      %s1296 = ssub.s32 128, 128
      %1297 = vsyncadd [#allocation12], %s1296
      %s1299 = sshll.u32 [#allocation11], 4
      %s1300 = int_to_ptr.vmem [resolvable:$true] %s1299
      %1302 = dma.vmem_to_hbm [thread:$0]  %s1300, 128, %s6, [#allocation12]
    $region41: #{tpu_custom_call.1} parent=1 // pred_fallthru
      _
    // Predicated region
    $region42: #{tpu_custom_call.1} parent=1 // pred_check
      _
    $region43: #{tpu_custom_call.1} parent=1 // pred_check_branch
      %1304 = sbr.rel (0) target = $region45
    $region44: #{tpu_custom_call.1} parent=1 // pred_region
      %1305 = dma.done [#allocation5], 256
    $region45: #{tpu_custom_call.1} parent=1 // pred_fallthru
      _
    // Predicated region
    $region46: #{tpu_custom_call.1} parent=1 // pred_check
      _
    $region47: #{tpu_custom_call.1} parent=1 // pred_check_branch
      %1307 = sbr.rel (0) target = $region49
    $region48: #{tpu_custom_call.1} parent=1 // pred_region
      %1308 = dma.done [#allocation12], 128
    $region49: #{tpu_custom_call.1} parent=1 // pred_fallthru
      _
    %1309 = vsyncpa [#allocation4], 1
    %1310 = vsyncpa [#allocation9], 1
    %1311 = vsyncpa [#allocation5], 1
    %1312 = vsyncpa [#allocation12], 1
    %1313 = vsyncpa [#allocation6], 1

</llo_original>
